<compile_context>
chip_gen: v7x
topology: tpu7x:2x2x1
jax: 0.10.0
libtpu: 0.0.40
codegen_flags: <defaults>
</compile_context>

<pallas_src>
import numpy as np
import jax
import jax.numpy as jnp
from jax.experimental import pallas as pl
from jax.experimental.pallas import tpu as pltpu  # noqa: F401  (TPU backend)


# ---------------------------------------------------------------------------
# Fused Projector kernel: 6 LSTM chains as one recurrence + net_end MLP
# ---------------------------------------------------------------------------
def _make_projector_kernel(L, Np):
    def kernel(x_ref, wi_ref, wh_ref, b_ref, w1_ref, b1_ref, w2_ref, b2_ref,
               o_ref):
        GW = wh_ref.shape[0]          # padded per-gate group width (k*128)

        # Hoisted input projection: ONE MXU op covers all timesteps, both
        # directions and all 3 branches (bf16 operands, f32 accumulation).
        gin = jnp.dot(x_ref[...], wi_ref[...],
                      preferred_element_type=jnp.float32) + b_ref[...]
        # gin: (L*Np, 4*GW), row block t holds [x[t] fwd-gates | x[L-1-t] bwd-gates]
        # already interleaved into the i|f|g|o grouped layout.

        wh = wh_ref[...]              # (GW, 4*GW) block-diagonal recurrent weight
        h = jnp.zeros((Np, GW), jnp.float32)
        c = jnp.zeros((Np, GW), jnp.float32)

        def sig(v):                   # one EUP push instead of exp + reciprocal
            return 0.5 * jnp.tanh(0.5 * v) + 0.5

        # Fully unrolled serial recurrence (L static & small): one fused
        # (Np, GW) x (GW, 4*GW) matmul and 4 vreg-wide nonlinearities per step.
        # TODO(synk): hold wh stationary in the MXU across steps via
        # pltpu.matmul_push_rhs/acc_lhs/pop to shave per-step RHS-load latency.
        for t in range(L):
            g = gin[t * Np:(t + 1) * Np, :] + jnp.dot(
                h, wh, preferred_element_type=jnp.float32)      # (Np, 4*GW)
            i_g = sig(g[:, 0:GW])
            f_g = sig(g[:, GW:2 * GW])
            g_g = jnp.tanh(g[:, 2 * GW:3 * GW])
            o_g = sig(g[:, 3 * GW:4 * GW])
            c = f_g * c + i_g * g_g
            h = o_g * jnp.tanh(c)

        # net_end: per-chain mean readout folded into w1_eff = R @ W1, then
        # Linear(6->128) -> ReLU -> Linear(128->32), all on whole vregs.
        h1 = jnp.maximum(
            jnp.dot(h, w1_ref[...], preferred_element_type=jnp.float32)
            + b1_ref[...], 0.0)
        o_ref[...] = (jnp.dot(h1, w2_ref[...],
                              preferred_element_type=jnp.float32)
                      + b2_ref[...]).astype(o_ref.dtype)
    return kernel


# ---------------------------------------------------------------------------
# One-time weight fusion (hoisted out of the per-call path)
# ---------------------------------------------------------------------------
def prepare_projector_params(p0, p1, p2, w1, b1, w2, b2, in_dim):
    """Fuse all Projector weights once, host-side.

    Builds:
      wi_comb (2D, 4*GW) bf16 : input weights for all 6 chains; rows 0:D are
               read against x[t] (forward chains), rows D:2D against x[L-1-t]
               (backward chains); the ::2 / ::4 nearest downsamples become
               zero rows.  Gate columns grouped i|f|g|o, each group GW wide.
      wh_comb (GW, 4*GW) f32  : block-diagonal recurrent weights.
      b_comb  (1, 4*GW)  f32  : b_ih + b_hh per chain per gate.
      w1_eff  (GW, 128)  f32  : (mean-readout matrix R) @ W1 of net_end.
    Padded lanes have zero weights/bias, so their h/c stay exactly 0.
    """
    D = in_dim
    branches = [(p0, 1), (p1, 2), (p2, 4)]

    # Chain order inside the fused state: fwd0, fwd1, fwd2, bwd0, bwd1, bwd2.
    chains = []
    for (wif, whf, bf, _wib, _whb, _bb), stride in branches:
        chains.append((np.asarray(wif), np.asarray(whf), np.asarray(bf),
                       stride, False))
    for (_wif, _whf, _bf, wib, whb, bb), stride in branches:
        chains.append((np.asarray(wib), np.asarray(whb), np.asarray(bb),
                       stride, True))

    widths = [c[1].shape[0] for c in chains]
    offs = np.concatenate([[0], np.cumsum(widths)])
    HT = int(offs[-1])
    GW = int(-(-HT // 128) * 128)        # pad each gate group to 128-lane multiple

    wi_comb = np.zeros((2 * D, 4 * GW), np.float32)
    wh_comb = np.zeros((GW, 4 * GW), np.float32)
    b_comb = np.zeros((1, 4 * GW), np.float32)
    for ci, (wi, wh, b, stride, is_bwd) in enumerate(chains):
        H = widths[ci]
        off = int(offs[ci])
        rows = (D if is_bwd else 0) + np.arange(0, D, stride)  # ::stride downsample
        for g in range(4):                                     # PyTorch order i,f,g,o
            cs = slice(g * GW + off, g * GW + off + H)
            wi_comb[rows, cs] = wi[:, g * H:(g + 1) * H]
            wh_comb[off:off + H, cs] = wh[:, g * H:(g + 1) * H]
            b_comb[0, cs] = b[0, g * H:(g + 1) * H]

    # Feature order expected by net_end: (fwd0, bwd0, fwd1, bwd1, fwd2, bwd2),
    # each = mean of that chain's final hidden state.  Fold into W1.
    feat_chain = [0, 3, 1, 4, 2, 5]
    R = np.zeros((GW, 6), np.float32)
    for j, ci in enumerate(feat_chain):
        H = widths[ci]
        off = int(offs[ci])
        R[off:off + H, j] = 1.0 / H
    w1_eff = R @ np.asarray(w1, np.float32)

    return (jnp.asarray(wi_comb, jnp.bfloat16),
            jnp.asarray(wh_comb, jnp.float32),
            jnp.asarray(b_comb, jnp.float32),
            jnp.asarray(w1_eff, jnp.float32),
            jnp.asarray(b1, jnp.float32),
            jnp.asarray(w2, jnp.float32),
            jnp.asarray(b2, jnp.float32))


@jax.jit
def projector_forward(x, fused):
    """x: (L, N, D) -> (N, dense_dims[1])."""
    wi_comb, wh_comb, b_comb, w1_eff, b1, w2, b2 = fused
    L, N, D = x.shape
    Np = max(8, ((N + 7) // 8) * 8)       # pad batch to a sublane multiple
    out_dim = w2.shape[1]

    # Pair each timestep with its time-reversed counterpart so forward and
    # backward chains read a single tile-aligned gin slab per step.
    x_bi = jnp.concatenate([x, x[::-1]], axis=-1)          # (L, N, 2D)
    x_bi = jnp.pad(x_bi, ((0, 0), (0, Np - N), (0, 0)))
    x_bi = x_bi.reshape(L * Np, 2 * D).astype(jnp.bfloat16)

    # Single launch, everything VMEM-resident (tiny at these shapes).
    # TODO(synk): at realistic L/N on v7x, split batch over a parallel grid
    # axis (2nd TensorCore) and chunk the sequence over a grid axis / bf16 gin
    # to fit the 64 MiB VMEM budget.
    out = pl.pallas_call(
        _make_projector_kernel(L, Np),
        out_shape=jax.ShapeDtypeStruct((Np, out_dim), jnp.float32),
    )(x_bi, wi_comb, wh_comb, b_comb, w1_eff, b1, w2, b2)
    return out[:N]


# ---------------------------------------------------------------------------
# Parameter init (deterministic, matching the module's __init__ shapes)
# ---------------------------------------------------------------------------
def init_lstm_params(key, input_size, hidden_size):
    """Bidirectional single-layer LSTM params, PyTorch-style uniform init.

    Weights stored pre-transposed: W_ih as (input, 4H), W_hh as (H, 4H).
    Biases b_ih + b_hh pre-summed into a single (1, 4H) row per direction.
    """
    k = hidden_size ** -0.5
    keys = jax.random.split(key, 8)
    u = lambda kk, shape: jax.random.uniform(kk, shape, jnp.float32, -k, k)
    wif = u(keys[0], (input_size, 4 * hidden_size))
    whf = u(keys[1], (hidden_size, 4 * hidden_size))
    bf = u(keys[2], (1, 4 * hidden_size)) + u(keys[3], (1, 4 * hidden_size))
    wib = u(keys[4], (input_size, 4 * hidden_size))
    whb = u(keys[5], (hidden_size, 4 * hidden_size))
    bb = u(keys[6], (1, 4 * hidden_size)) + u(keys[7], (1, 4 * hidden_size))
    return wif, whf, bf, wib, whb, bb


def init_linear_params(key, fan_in, fan_out):
    k = fan_in ** -0.5
    kw, kb = jax.random.split(key)
    w = jax.random.uniform(kw, (fan_in, fan_out), jnp.float32, -k, k)
    b = jax.random.uniform(kb, (1, fan_out), jnp.float32, -k, k)
    return w, b


if __name__ == "__main__":
    key = jax.random.PRNGKey(0)
    L, N, D = 8, 2, 32                  # small in_dim consistent with the module
    dense_dims = (128, 32)

    kx, k0, k1, k2, k3, k4 = jax.random.split(key, 6)
    x = jax.random.normal(kx, (L, N, D), jnp.float32)

    p0 = init_lstm_params(k0, D, D)              # lstm0: in_dim   -> in_dim
    p1 = init_lstm_params(k1, D // 2, D // 2)    # lstm1: in_dim/2 -> in_dim/2
    p2 = init_lstm_params(k2, D // 4, D // 4)    # lstm2: in_dim/4 -> in_dim/4
    w1, b1 = init_linear_params(k3, 6, dense_dims[0])
    w2, b2 = init_linear_params(k4, dense_dims[0], dense_dims[1])

    fused = prepare_projector_params(p0, p1, p2, w1, b1, w2, b2, in_dim=D)

    out = projector_forward(x, fused)
    out = jax.block_until_ready(out)
    assert out.shape == (N, dense_dims[1]) and out.dtype == jnp.float32
    assert bool(jnp.all(jnp.isfinite(out)))
    print("KERNEL_OK")
</pallas_src>

<mosaic_0001>
module attributes {stable_mosaic.version = 11 : i64} {
  func.func @kernel(%arg0: memref<64x64xbf16, #tpu.memory_space<vmem>>, %arg1: memref<64x512xbf16, #tpu.memory_space<vmem>>, %arg2: memref<128x512xf32, #tpu.memory_space<vmem>>, %arg3: memref<1x512xf32, #tpu.memory_space<vmem>>, %arg4: memref<128x128xf32, #tpu.memory_space<vmem>>, %arg5: memref<1x128xf32, #tpu.memory_space<vmem>>, %arg6: memref<128x32xf32, #tpu.memory_space<vmem>>, %arg7: memref<1x32xf32, #tpu.memory_space<vmem>>, %arg8: memref<8x32xf32, #tpu.memory_space<vmem>>) attributes {dimension_semantics = [], scalar_prefetch = 0 : i64, scratch_operands = 0 : i64, tpu.core_type = #tpu.core_type<tc>} {
    %c0 = arith.constant 0 : index
    %c0_0 = arith.constant 0 : index
    %0 = vector.load %arg0[%c0, %c0_0] : memref<64x64xbf16, #tpu.memory_space<vmem>>, vector<64x64xbf16>
    %c0_1 = arith.constant 0 : index
    %c0_2 = arith.constant 0 : index
    %1 = vector.load %arg1[%c0_1, %c0_2] : memref<64x512xbf16, #tpu.memory_space<vmem>>, vector<64x512xbf16>
    %cst = arith.constant dense<0.000000e+00> : vector<64x512xf32>
    %2 = tpu.matmul %0, %1, %cst {dimension_numbers = #tpu.dot_dimension_numbers<[1], [0], [0], [1], [0, 0, 1, 1], [], []>} : vector<64x64xbf16>, vector<64x512xbf16>, vector<64x512xf32> -> vector<64x512xf32>
    %c0_3 = arith.constant 0 : index
    %c0_4 = arith.constant 0 : index
    %3 = vector.load %arg3[%c0_3, %c0_4] : memref<1x512xf32, #tpu.memory_space<vmem>>, vector<1x512xf32>
    %4 = vector.broadcast %3 : vector<1x512xf32> to vector<64x512xf32>
    %5 = arith.addf %2, %4 : vector<64x512xf32>
    %c0_5 = arith.constant 0 : index
    %c0_6 = arith.constant 0 : index
    %6 = vector.load %arg2[%c0_5, %c0_6] : memref<128x512xf32, #tpu.memory_space<vmem>>, vector<128x512xf32>
    %cst_7 = arith.constant 0.000000e+00 : f32
    %7 = vector.broadcast %cst_7 : f32 to vector<8x128xf32>
    %cst_8 = arith.constant 0.000000e+00 : f32
    %8 = vector.broadcast %cst_8 : f32 to vector<8x128xf32>
    %9 = vector.extract_strided_slice %5 {offsets = [0, 0], sizes = [8, 512], strides = [1, 1]} : vector<64x512xf32> to vector<8x512xf32>
    %cst_9 = arith.constant dense<0.000000e+00> : vector<8x512xf32>
    %10 = tpu.matmul %7, %6, %cst_9 {dimension_numbers = #tpu.dot_dimension_numbers<[1], [0], [0], [1], [0, 0, 1, 1], [], []>} : vector<8x128xf32>, vector<128x512xf32>, vector<8x512xf32> -> vector<8x512xf32>
    %11 = arith.addf %9, %10 : vector<8x512xf32>
    %12 = vector.extract_strided_slice %11 {offsets = [0, 0], sizes = [8, 128], strides = [1, 1]} : vector<8x512xf32> to vector<8x128xf32>
    %cst_10 = arith.constant 5.000000e-01 : f32
    %13 = vector.broadcast %cst_10 : f32 to vector<8x128xf32>
    %14 = arith.mulf %13, %12 : vector<8x128xf32>
    %15 = math.tanh %14 : vector<8x128xf32>
    %cst_11 = arith.constant 5.000000e-01 : f32
    %16 = vector.broadcast %cst_11 : f32 to vector<8x128xf32>
    %17 = arith.mulf %16, %15 : vector<8x128xf32>
    %cst_12 = arith.constant 5.000000e-01 : f32
    %18 = vector.broadcast %cst_12 : f32 to vector<8x128xf32>
    %19 = arith.addf %17, %18 : vector<8x128xf32>
    %20 = vector.extract_strided_slice %11 {offsets = [0, 128], sizes = [8, 128], strides = [1, 1]} : vector<8x512xf32> to vector<8x128xf32>
    %cst_13 = arith.constant 5.000000e-01 : f32
    %21 = vector.broadcast %cst_13 : f32 to vector<8x128xf32>
    %22 = arith.mulf %21, %20 : vector<8x128xf32>
    %23 = math.tanh %22 : vector<8x128xf32>
    %cst_14 = arith.constant 5.000000e-01 : f32
    %24 = vector.broadcast %cst_14 : f32 to vector<8x128xf32>
    %25 = arith.mulf %24, %23 : vector<8x128xf32>
    %cst_15 = arith.constant 5.000000e-01 : f32
    %26 = vector.broadcast %cst_15 : f32 to vector<8x128xf32>
    %27 = arith.addf %25, %26 : vector<8x128xf32>
    %28 = vector.extract_strided_slice %11 {offsets = [0, 256], sizes = [8, 128], strides = [1, 1]} : vector<8x512xf32> to vector<8x128xf32>
    %29 = math.tanh %28 : vector<8x128xf32>
    %30 = vector.extract_strided_slice %11 {offsets = [0, 384], sizes = [8, 128], strides = [1, 1]} : vector<8x512xf32> to vector<8x128xf32>
    %cst_16 = arith.constant 5.000000e-01 : f32
    %31 = vector.broadcast %cst_16 : f32 to vector<8x128xf32>
    %32 = arith.mulf %31, %30 : vector<8x128xf32>
    %33 = math.tanh %32 : vector<8x128xf32>
    %cst_17 = arith.constant 5.000000e-01 : f32
    %34 = vector.broadcast %cst_17 : f32 to vector<8x128xf32>
    %35 = arith.mulf %34, %33 : vector<8x128xf32>
    %cst_18 = arith.constant 5.000000e-01 : f32
    %36 = vector.broadcast %cst_18 : f32 to vector<8x128xf32>
    %37 = arith.addf %35, %36 : vector<8x128xf32>
    %38 = arith.mulf %27, %8 : vector<8x128xf32>
    %39 = arith.mulf %19, %29 : vector<8x128xf32>
    %40 = arith.addf %38, %39 : vector<8x128xf32>
    %41 = math.tanh %40 : vector<8x128xf32>
    %42 = arith.mulf %37, %41 : vector<8x128xf32>
    %43 = vector.extract_strided_slice %5 {offsets = [8, 0], sizes = [8, 512], strides = [1, 1]} : vector<64x512xf32> to vector<8x512xf32>
    %cst_19 = arith.constant dense<0.000000e+00> : vector<8x512xf32>
    %44 = tpu.matmul %42, %6, %cst_19 {dimension_numbers = #tpu.dot_dimension_numbers<[1], [0], [0], [1], [0, 0, 1, 1], [], []>} : vector<8x128xf32>, vector<128x512xf32>, vector<8x512xf32> -> vector<8x512xf32>
    %45 = arith.addf %43, %44 : vector<8x512xf32>
    %46 = vector.extract_strided_slice %45 {offsets = [0, 0], sizes = [8, 128], strides = [1, 1]} : vector<8x512xf32> to vector<8x128xf32>
    %cst_20 = arith.constant 5.000000e-01 : f32
    %47 = vector.broadcast %cst_20 : f32 to vector<8x128xf32>
    %48 = arith.mulf %47, %46 : vector<8x128xf32>
    %49 = math.tanh %48 : vector<8x128xf32>
    %cst_21 = arith.constant 5.000000e-01 : f32
    %50 = vector.broadcast %cst_21 : f32 to vector<8x128xf32>
    %51 = arith.mulf %50, %49 : vector<8x128xf32>
    %cst_22 = arith.constant 5.000000e-01 : f32
    %52 = vector.broadcast %cst_22 : f32 to vector<8x128xf32>
    %53 = arith.addf %51, %52 : vector<8x128xf32>
    %54 = vector.extract_strided_slice %45 {offsets = [0, 128], sizes = [8, 128], strides = [1, 1]} : vector<8x512xf32> to vector<8x128xf32>
    %cst_23 = arith.constant 5.000000e-01 : f32
    %55 = vector.broadcast %cst_23 : f32 to vector<8x128xf32>
    %56 = arith.mulf %55, %54 : vector<8x128xf32>
    %57 = math.tanh %56 : vector<8x128xf32>
    %cst_24 = arith.constant 5.000000e-01 : f32
    %58 = vector.broadcast %cst_24 : f32 to vector<8x128xf32>
    %59 = arith.mulf %58, %57 : vector<8x128xf32>
    %cst_25 = arith.constant 5.000000e-01 : f32
    %60 = vector.broadcast %cst_25 : f32 to vector<8x128xf32>
    %61 = arith.addf %59, %60 : vector<8x128xf32>
    %62 = vector.extract_strided_slice %45 {offsets = [0, 256], sizes = [8, 128], strides = [1, 1]} : vector<8x512xf32> to vector<8x128xf32>
    %63 = math.tanh %62 : vector<8x128xf32>
    %64 = vector.extract_strided_slice %45 {offsets = [0, 384], sizes = [8, 128], strides = [1, 1]} : vector<8x512xf32> to vector<8x128xf32>
    %cst_26 = arith.constant 5.000000e-01 : f32
    %65 = vector.broadcast %cst_26 : f32 to vector<8x128xf32>
    %66 = arith.mulf %65, %64 : vector<8x128xf32>
    %67 = math.tanh %66 : vector<8x128xf32>
    %cst_27 = arith.constant 5.000000e-01 : f32
    %68 = vector.broadcast %cst_27 : f32 to vector<8x128xf32>
    %69 = arith.mulf %68, %67 : vector<8x128xf32>
    %cst_28 = arith.constant 5.000000e-01 : f32
    %70 = vector.broadcast %cst_28 : f32 to vector<8x128xf32>
    %71 = arith.addf %69, %70 : vector<8x128xf32>
    %72 = arith.mulf %61, %40 : vector<8x128xf32>
    %73 = arith.mulf %53, %63 : vector<8x128xf32>
    %74 = arith.addf %72, %73 : vector<8x128xf32>
    %75 = math.tanh %74 : vector<8x128xf32>
    %76 = arith.mulf %71, %75 : vector<8x128xf32>
    %77 = vector.extract_strided_slice %5 {offsets = [16, 0], sizes = [8, 512], strides = [1, 1]} : vector<64x512xf32> to vector<8x512xf32>
    %cst_29 = arith.constant dense<0.000000e+00> : vector<8x512xf32>
    %78 = tpu.matmul %76, %6, %cst_29 {dimension_numbers = #tpu.dot_dimension_numbers<[1], [0], [0], [1], [0, 0, 1, 1], [], []>} : vector<8x128xf32>, vector<128x512xf32>, vector<8x512xf32> -> vector<8x512xf32>
    %79 = arith.addf %77, %78 : vector<8x512xf32>
    %80 = vector.extract_strided_slice %79 {offsets = [0, 0], sizes = [8, 128], strides = [1, 1]} : vector<8x512xf32> to vector<8x128xf32>
    %cst_30 = arith.constant 5.000000e-01 : f32
    %81 = vector.broadcast %cst_30 : f32 to vector<8x128xf32>
    %82 = arith.mulf %81, %80 : vector<8x128xf32>
    %83 = math.tanh %82 : vector<8x128xf32>
    %cst_31 = arith.constant 5.000000e-01 : f32
    %84 = vector.broadcast %cst_31 : f32 to vector<8x128xf32>
    %85 = arith.mulf %84, %83 : vector<8x128xf32>
    %cst_32 = arith.constant 5.000000e-01 : f32
    %86 = vector.broadcast %cst_32 : f32 to vector<8x128xf32>
    %87 = arith.addf %85, %86 : vector<8x128xf32>
    %88 = vector.extract_strided_slice %79 {offsets = [0, 128], sizes = [8, 128], strides = [1, 1]} : vector<8x512xf32> to vector<8x128xf32>
    %cst_33 = arith.constant 5.000000e-01 : f32
    %89 = vector.broadcast %cst_33 : f32 to vector<8x128xf32>
    %90 = arith.mulf %89, %88 : vector<8x128xf32>
    %91 = math.tanh %90 : vector<8x128xf32>
    %cst_34 = arith.constant 5.000000e-01 : f32
    %92 = vector.broadcast %cst_34 : f32 to vector<8x128xf32>
    %93 = arith.mulf %92, %91 : vector<8x128xf32>
    %cst_35 = arith.constant 5.000000e-01 : f32
    %94 = vector.broadcast %cst_35 : f32 to vector<8x128xf32>
    %95 = arith.addf %93, %94 : vector<8x128xf32>
    %96 = vector.extract_strided_slice %79 {offsets = [0, 256], sizes = [8, 128], strides = [1, 1]} : vector<8x512xf32> to vector<8x128xf32>
    %97 = math.tanh %96 : vector<8x128xf32>
    %98 = vector.extract_strided_slice %79 {offsets = [0, 384], sizes = [8, 128], strides = [1, 1]} : vector<8x512xf32> to vector<8x128xf32>
    %cst_36 = arith.constant 5.000000e-01 : f32
    %99 = vector.broadcast %cst_36 : f32 to vector<8x128xf32>
    %100 = arith.mulf %99, %98 : vector<8x128xf32>
    %101 = math.tanh %100 : vector<8x128xf32>
    %cst_37 = arith.constant 5.000000e-01 : f32
    %102 = vector.broadcast %cst_37 : f32 to vector<8x128xf32>
    %103 = arith.mulf %102, %101 : vector<8x128xf32>
    %cst_38 = arith.constant 5.000000e-01 : f32
    %104 = vector.broadcast %cst_38 : f32 to vector<8x128xf32>
    %105 = arith.addf %103, %104 : vector<8x128xf32>
    %106 = arith.mulf %95, %74 : vector<8x128xf32>
    %107 = arith.mulf %87, %97 : vector<8x128xf32>
    %108 = arith.addf %106, %107 : vector<8x128xf32>
    %109 = math.tanh %108 : vector<8x128xf32>
    %110 = arith.mulf %105, %109 : vector<8x128xf32>
    %111 = vector.extract_strided_slice %5 {offsets = [24, 0], sizes = [8, 512], strides = [1, 1]} : vector<64x512xf32> to vector<8x512xf32>
    %cst_39 = arith.constant dense<0.000000e+00> : vector<8x512xf32>
    %112 = tpu.matmul %110, %6, %cst_39 {dimension_numbers = #tpu.dot_dimension_numbers<[1], [0], [0], [1], [0, 0, 1, 1], [], []>} : vector<8x128xf32>, vector<128x512xf32>, vector<8x512xf32> -> vector<8x512xf32>
    %113 = arith.addf %111, %112 : vector<8x512xf32>
    %114 = vector.extract_strided_slice %113 {offsets = [0, 0], sizes = [8, 128], strides = [1, 1]} : vector<8x512xf32> to vector<8x128xf32>
    %cst_40 = arith.constant 5.000000e-01 : f32
    %115 = vector.broadcast %cst_40 : f32 to vector<8x128xf32>
    %116 = arith.mulf %115, %114 : vector<8x128xf32>
    %117 = math.tanh %116 : vector<8x128xf32>
    %cst_41 = arith.constant 5.000000e-01 : f32
    %118 = vector.broadcast %cst_41 : f32 to vector<8x128xf32>
    %119 = arith.mulf %118, %117 : vector<8x128xf32>
    %cst_42 = arith.constant 5.000000e-01 : f32
    %120 = vector.broadcast %cst_42 : f32 to vector<8x128xf32>
    %121 = arith.addf %119, %120 : vector<8x128xf32>
    %122 = vector.extract_strided_slice %113 {offsets = [0, 128], sizes = [8, 128], strides = [1, 1]} : vector<8x512xf32> to vector<8x128xf32>
    %cst_43 = arith.constant 5.000000e-01 : f32
    %123 = vector.broadcast %cst_43 : f32 to vector<8x128xf32>
    %124 = arith.mulf %123, %122 : vector<8x128xf32>
    %125 = math.tanh %124 : vector<8x128xf32>
    %cst_44 = arith.constant 5.000000e-01 : f32
    %126 = vector.broadcast %cst_44 : f32 to vector<8x128xf32>
    %127 = arith.mulf %126, %125 : vector<8x128xf32>
    %cst_45 = arith.constant 5.000000e-01 : f32
    %128 = vector.broadcast %cst_45 : f32 to vector<8x128xf32>
    %129 = arith.addf %127, %128 : vector<8x128xf32>
    %130 = vector.extract_strided_slice %113 {offsets = [0, 256], sizes = [8, 128], strides = [1, 1]} : vector<8x512xf32> to vector<8x128xf32>
    %131 = math.tanh %130 : vector<8x128xf32>
    %132 = vector.extract_strided_slice %113 {offsets = [0, 384], sizes = [8, 128], strides = [1, 1]} : vector<8x512xf32> to vector<8x128xf32>
    %cst_46 = arith.constant 5.000000e-01 : f32
    %133 = vector.broadcast %cst_46 : f32 to vector<8x128xf32>
    %134 = arith.mulf %133, %132 : vector<8x128xf32>
    %135 = math.tanh %134 : vector<8x128xf32>
    %cst_47 = arith.constant 5.000000e-01 : f32
    %136 = vector.broadcast %cst_47 : f32 to vector<8x128xf32>
    %137 = arith.mulf %136, %135 : vector<8x128xf32>
    %cst_48 = arith.constant 5.000000e-01 : f32
    %138 = vector.broadcast %cst_48 : f32 to vector<8x128xf32>
    %139 = arith.addf %137, %138 : vector<8x128xf32>
    %140 = arith.mulf %129, %108 : vector<8x128xf32>
    %141 = arith.mulf %121, %131 : vector<8x128xf32>
    %142 = arith.addf %140, %141 : vector<8x128xf32>
    %143 = math.tanh %142 : vector<8x128xf32>
    %144 = arith.mulf %139, %143 : vector<8x128xf32>
    %145 = vector.extract_strided_slice %5 {offsets = [32, 0], sizes = [8, 512], strides = [1, 1]} : vector<64x512xf32> to vector<8x512xf32>
    %cst_49 = arith.constant dense<0.000000e+00> : vector<8x512xf32>
    %146 = tpu.matmul %144, %6, %cst_49 {dimension_numbers = #tpu.dot_dimension_numbers<[1], [0], [0], [1], [0, 0, 1, 1], [], []>} : vector<8x128xf32>, vector<128x512xf32>, vector<8x512xf32> -> vector<8x512xf32>
    %147 = arith.addf %145, %146 : vector<8x512xf32>
    %148 = vector.extract_strided_slice %147 {offsets = [0, 0], sizes = [8, 128], strides = [1, 1]} : vector<8x512xf32> to vector<8x128xf32>
    %cst_50 = arith.constant 5.000000e-01 : f32
    %149 = vector.broadcast %cst_50 : f32 to vector<8x128xf32>
    %150 = arith.mulf %149, %148 : vector<8x128xf32>
    %151 = math.tanh %150 : vector<8x128xf32>
    %cst_51 = arith.constant 5.000000e-01 : f32
    %152 = vector.broadcast %cst_51 : f32 to vector<8x128xf32>
    %153 = arith.mulf %152, %151 : vector<8x128xf32>
    %cst_52 = arith.constant 5.000000e-01 : f32
    %154 = vector.broadcast %cst_52 : f32 to vector<8x128xf32>
    %155 = arith.addf %153, %154 : vector<8x128xf32>
    %156 = vector.extract_strided_slice %147 {offsets = [0, 128], sizes = [8, 128], strides = [1, 1]} : vector<8x512xf32> to vector<8x128xf32>
    %cst_53 = arith.constant 5.000000e-01 : f32
    %157 = vector.broadcast %cst_53 : f32 to vector<8x128xf32>
    %158 = arith.mulf %157, %156 : vector<8x128xf32>
    %159 = math.tanh %158 : vector<8x128xf32>
    %cst_54 = arith.constant 5.000000e-01 : f32
    %160 = vector.broadcast %cst_54 : f32 to vector<8x128xf32>
    %161 = arith.mulf %160, %159 : vector<8x128xf32>
    %cst_55 = arith.constant 5.000000e-01 : f32
    %162 = vector.broadcast %cst_55 : f32 to vector<8x128xf32>
    %163 = arith.addf %161, %162 : vector<8x128xf32>
    %164 = vector.extract_strided_slice %147 {offsets = [0, 256], sizes = [8, 128], strides = [1, 1]} : vector<8x512xf32> to vector<8x128xf32>
    %165 = math.tanh %164 : vector<8x128xf32>
    %166 = vector.extract_strided_slice %147 {offsets = [0, 384], sizes = [8, 128], strides = [1, 1]} : vector<8x512xf32> to vector<8x128xf32>
    %cst_56 = arith.constant 5.000000e-01 : f32
    %167 = vector.broadcast %cst_56 : f32 to vector<8x128xf32>
    %168 = arith.mulf %167, %166 : vector<8x128xf32>
    %169 = math.tanh %168 : vector<8x128xf32>
    %cst_57 = arith.constant 5.000000e-01 : f32
    %170 = vector.broadcast %cst_57 : f32 to vector<8x128xf32>
    %171 = arith.mulf %170, %169 : vector<8x128xf32>
    %cst_58 = arith.constant 5.000000e-01 : f32
    %172 = vector.broadcast %cst_58 : f32 to vector<8x128xf32>
    %173 = arith.addf %171, %172 : vector<8x128xf32>
    %174 = arith.mulf %163, %142 : vector<8x128xf32>
    %175 = arith.mulf %155, %165 : vector<8x128xf32>
    %176 = arith.addf %174, %175 : vector<8x128xf32>
    %177 = math.tanh %176 : vector<8x128xf32>
    %178 = arith.mulf %173, %177 : vector<8x128xf32>
    %179 = vector.extract_strided_slice %5 {offsets = [40, 0], sizes = [8, 512], strides = [1, 1]} : vector<64x512xf32> to vector<8x512xf32>
    %cst_59 = arith.constant dense<0.000000e+00> : vector<8x512xf32>
    %180 = tpu.matmul %178, %6, %cst_59 {dimension_numbers = #tpu.dot_dimension_numbers<[1], [0], [0], [1], [0, 0, 1, 1], [], []>} : vector<8x128xf32>, vector<128x512xf32>, vector<8x512xf32> -> vector<8x512xf32>
    %181 = arith.addf %179, %180 : vector<8x512xf32>
    %182 = vector.extract_strided_slice %181 {offsets = [0, 0], sizes = [8, 128], strides = [1, 1]} : vector<8x512xf32> to vector<8x128xf32>
    %cst_60 = arith.constant 5.000000e-01 : f32
    %183 = vector.broadcast %cst_60 : f32 to vector<8x128xf32>
    %184 = arith.mulf %183, %182 : vector<8x128xf32>
    %185 = math.tanh %184 : vector<8x128xf32>
    %cst_61 = arith.constant 5.000000e-01 : f32
    %186 = vector.broadcast %cst_61 : f32 to vector<8x128xf32>
    %187 = arith.mulf %186, %185 : vector<8x128xf32>
    %cst_62 = arith.constant 5.000000e-01 : f32
    %188 = vector.broadcast %cst_62 : f32 to vector<8x128xf32>
    %189 = arith.addf %187, %188 : vector<8x128xf32>
    %190 = vector.extract_strided_slice %181 {offsets = [0, 128], sizes = [8, 128], strides = [1, 1]} : vector<8x512xf32> to vector<8x128xf32>
    %cst_63 = arith.constant 5.000000e-01 : f32
    %191 = vector.broadcast %cst_63 : f32 to vector<8x128xf32>
    %192 = arith.mulf %191, %190 : vector<8x128xf32>
    %193 = math.tanh %192 : vector<8x128xf32>
    %cst_64 = arith.constant 5.000000e-01 : f32
    %194 = vector.broadcast %cst_64 : f32 to vector<8x128xf32>
    %195 = arith.mulf %194, %193 : vector<8x128xf32>
    %cst_65 = arith.constant 5.000000e-01 : f32
    %196 = vector.broadcast %cst_65 : f32 to vector<8x128xf32>
    %197 = arith.addf %195, %196 : vector<8x128xf32>
    %198 = vector.extract_strided_slice %181 {offsets = [0, 256], sizes = [8, 128], strides = [1, 1]} : vector<8x512xf32> to vector<8x128xf32>
    %199 = math.tanh %198 : vector<8x128xf32>
    %200 = vector.extract_strided_slice %181 {offsets = [0, 384], sizes = [8, 128], strides = [1, 1]} : vector<8x512xf32> to vector<8x128xf32>
    %cst_66 = arith.constant 5.000000e-01 : f32
    %201 = vector.broadcast %cst_66 : f32 to vector<8x128xf32>
    %202 = arith.mulf %201, %200 : vector<8x128xf32>
    %203 = math.tanh %202 : vector<8x128xf32>
    %cst_67 = arith.constant 5.000000e-01 : f32
    %204 = vector.broadcast %cst_67 : f32 to vector<8x128xf32>
    %205 = arith.mulf %204, %203 : vector<8x128xf32>
    %cst_68 = arith.constant 5.000000e-01 : f32
    %206 = vector.broadcast %cst_68 : f32 to vector<8x128xf32>
    %207 = arith.addf %205, %206 : vector<8x128xf32>
    %208 = arith.mulf %197, %176 : vector<8x128xf32>
    %209 = arith.mulf %189, %199 : vector<8x128xf32>
    %210 = arith.addf %208, %209 : vector<8x128xf32>
    %211 = math.tanh %210 : vector<8x128xf32>
    %212 = arith.mulf %207, %211 : vector<8x128xf32>
    %213 = vector.extract_strided_slice %5 {offsets = [48, 0], sizes = [8, 512], strides = [1, 1]} : vector<64x512xf32> to vector<8x512xf32>
    %cst_69 = arith.constant dense<0.000000e+00> : vector<8x512xf32>
    %214 = tpu.matmul %212, %6, %cst_69 {dimension_numbers = #tpu.dot_dimension_numbers<[1], [0], [0], [1], [0, 0, 1, 1], [], []>} : vector<8x128xf32>, vector<128x512xf32>, vector<8x512xf32> -> vector<8x512xf32>
    %215 = arith.addf %213, %214 : vector<8x512xf32>
    %216 = vector.extract_strided_slice %215 {offsets = [0, 0], sizes = [8, 128], strides = [1, 1]} : vector<8x512xf32> to vector<8x128xf32>
    %cst_70 = arith.constant 5.000000e-01 : f32
    %217 = vector.broadcast %cst_70 : f32 to vector<8x128xf32>
    %218 = arith.mulf %217, %216 : vector<8x128xf32>
    %219 = math.tanh %218 : vector<8x128xf32>
    %cst_71 = arith.constant 5.000000e-01 : f32
    %220 = vector.broadcast %cst_71 : f32 to vector<8x128xf32>
    %221 = arith.mulf %220, %219 : vector<8x128xf32>
    %cst_72 = arith.constant 5.000000e-01 : f32
    %222 = vector.broadcast %cst_72 : f32 to vector<8x128xf32>
    %223 = arith.addf %221, %222 : vector<8x128xf32>
    %224 = vector.extract_strided_slice %215 {offsets = [0, 128], sizes = [8, 128], strides = [1, 1]} : vector<8x512xf32> to vector<8x128xf32>
    %cst_73 = arith.constant 5.000000e-01 : f32
    %225 = vector.broadcast %cst_73 : f32 to vector<8x128xf32>
    %226 = arith.mulf %225, %224 : vector<8x128xf32>
    %227 = math.tanh %226 : vector<8x128xf32>
    %cst_74 = arith.constant 5.000000e-01 : f32
    %228 = vector.broadcast %cst_74 : f32 to vector<8x128xf32>
    %229 = arith.mulf %228, %227 : vector<8x128xf32>
    %cst_75 = arith.constant 5.000000e-01 : f32
    %230 = vector.broadcast %cst_75 : f32 to vector<8x128xf32>
    %231 = arith.addf %229, %230 : vector<8x128xf32>
    %232 = vector.extract_strided_slice %215 {offsets = [0, 256], sizes = [8, 128], strides = [1, 1]} : vector<8x512xf32> to vector<8x128xf32>
    %233 = math.tanh %232 : vector<8x128xf32>
    %234 = vector.extract_strided_slice %215 {offsets = [0, 384], sizes = [8, 128], strides = [1, 1]} : vector<8x512xf32> to vector<8x128xf32>
    %cst_76 = arith.constant 5.000000e-01 : f32
    %235 = vector.broadcast %cst_76 : f32 to vector<8x128xf32>
    %236 = arith.mulf %235, %234 : vector<8x128xf32>
    %237 = math.tanh %236 : vector<8x128xf32>
    %cst_77 = arith.constant 5.000000e-01 : f32
    %238 = vector.broadcast %cst_77 : f32 to vector<8x128xf32>
    %239 = arith.mulf %238, %237 : vector<8x128xf32>
    %cst_78 = arith.constant 5.000000e-01 : f32
    %240 = vector.broadcast %cst_78 : f32 to vector<8x128xf32>
    %241 = arith.addf %239, %240 : vector<8x128xf32>
    %242 = arith.mulf %231, %210 : vector<8x128xf32>
    %243 = arith.mulf %223, %233 : vector<8x128xf32>
    %244 = arith.addf %242, %243 : vector<8x128xf32>
    %245 = math.tanh %244 : vector<8x128xf32>
    %246 = arith.mulf %241, %245 : vector<8x128xf32>
    %247 = vector.extract_strided_slice %5 {offsets = [56, 0], sizes = [8, 512], strides = [1, 1]} : vector<64x512xf32> to vector<8x512xf32>
    %cst_79 = arith.constant dense<0.000000e+00> : vector<8x512xf32>
    %248 = tpu.matmul %246, %6, %cst_79 {dimension_numbers = #tpu.dot_dimension_numbers<[1], [0], [0], [1], [0, 0, 1, 1], [], []>} : vector<8x128xf32>, vector<128x512xf32>, vector<8x512xf32> -> vector<8x512xf32>
    %249 = arith.addf %247, %248 : vector<8x512xf32>
    %250 = vector.extract_strided_slice %249 {offsets = [0, 0], sizes = [8, 128], strides = [1, 1]} : vector<8x512xf32> to vector<8x128xf32>
    %cst_80 = arith.constant 5.000000e-01 : f32
    %251 = vector.broadcast %cst_80 : f32 to vector<8x128xf32>
    %252 = arith.mulf %251, %250 : vector<8x128xf32>
    %253 = math.tanh %252 : vector<8x128xf32>
    %cst_81 = arith.constant 5.000000e-01 : f32
    %254 = vector.broadcast %cst_81 : f32 to vector<8x128xf32>
    %255 = arith.mulf %254, %253 : vector<8x128xf32>
    %cst_82 = arith.constant 5.000000e-01 : f32
    %256 = vector.broadcast %cst_82 : f32 to vector<8x128xf32>
    %257 = arith.addf %255, %256 : vector<8x128xf32>
    %258 = vector.extract_strided_slice %249 {offsets = [0, 128], sizes = [8, 128], strides = [1, 1]} : vector<8x512xf32> to vector<8x128xf32>
    %cst_83 = arith.constant 5.000000e-01 : f32
    %259 = vector.broadcast %cst_83 : f32 to vector<8x128xf32>
    %260 = arith.mulf %259, %258 : vector<8x128xf32>
    %261 = math.tanh %260 : vector<8x128xf32>
    %cst_84 = arith.constant 5.000000e-01 : f32
    %262 = vector.broadcast %cst_84 : f32 to vector<8x128xf32>
    %263 = arith.mulf %262, %261 : vector<8x128xf32>
    %cst_85 = arith.constant 5.000000e-01 : f32
    %264 = vector.broadcast %cst_85 : f32 to vector<8x128xf32>
    %265 = arith.addf %263, %264 : vector<8x128xf32>
    %266 = vector.extract_strided_slice %249 {offsets = [0, 256], sizes = [8, 128], strides = [1, 1]} : vector<8x512xf32> to vector<8x128xf32>
    %267 = math.tanh %266 : vector<8x128xf32>
    %268 = vector.extract_strided_slice %249 {offsets = [0, 384], sizes = [8, 128], strides = [1, 1]} : vector<8x512xf32> to vector<8x128xf32>
    %cst_86 = arith.constant 5.000000e-01 : f32
    %269 = vector.broadcast %cst_86 : f32 to vector<8x128xf32>
    %270 = arith.mulf %269, %268 : vector<8x128xf32>
    %271 = math.tanh %270 : vector<8x128xf32>
    %cst_87 = arith.constant 5.000000e-01 : f32
    %272 = vector.broadcast %cst_87 : f32 to vector<8x128xf32>
    %273 = arith.mulf %272, %271 : vector<8x128xf32>
    %cst_88 = arith.constant 5.000000e-01 : f32
    %274 = vector.broadcast %cst_88 : f32 to vector<8x128xf32>
    %275 = arith.addf %273, %274 : vector<8x128xf32>
    %276 = arith.mulf %265, %244 : vector<8x128xf32>
    %277 = arith.mulf %257, %267 : vector<8x128xf32>
    %278 = arith.addf %276, %277 : vector<8x128xf32>
    %279 = math.tanh %278 : vector<8x128xf32>
    %280 = arith.mulf %275, %279 : vector<8x128xf32>
    %c0_89 = arith.constant 0 : index
    %c0_90 = arith.constant 0 : index
    %281 = vector.load %arg4[%c0_89, %c0_90] : memref<128x128xf32, #tpu.memory_space<vmem>>, vector<128x128xf32>
    %cst_91 = arith.constant dense<0.000000e+00> : vector<8x128xf32>
    %282 = tpu.matmul %280, %281, %cst_91 {dimension_numbers = #tpu.dot_dimension_numbers<[1], [0], [0], [1], [0, 0, 1, 1], [], []>} : vector<8x128xf32>, vector<128x128xf32>, vector<8x128xf32> -> vector<8x128xf32>
    %c0_92 = arith.constant 0 : index
    %c0_93 = arith.constant 0 : index
    %283 = vector.load %arg5[%c0_92, %c0_93] : memref<1x128xf32, #tpu.memory_space<vmem>>, vector<1x128xf32>
    %284 = vector.broadcast %283 : vector<1x128xf32> to vector<8x128xf32>
    %285 = arith.addf %282, %284 : vector<8x128xf32>
    %cst_94 = arith.constant 0.000000e+00 : f32
    %286 = vector.broadcast %cst_94 : f32 to vector<8x128xf32>
    %287 = arith.maximumf %285, %286 : vector<8x128xf32>
    %c0_95 = arith.constant 0 : index
    %c0_96 = arith.constant 0 : index
    %288 = vector.load %arg6[%c0_95, %c0_96] : memref<128x32xf32, #tpu.memory_space<vmem>>, vector<128x32xf32>
    %cst_97 = arith.constant dense<0.000000e+00> : vector<8x32xf32>
    %289 = tpu.matmul %287, %288, %cst_97 {dimension_numbers = #tpu.dot_dimension_numbers<[1], [0], [0], [1], [0, 0, 1, 1], [], []>} : vector<8x128xf32>, vector<128x32xf32>, vector<8x32xf32> -> vector<8x32xf32>
    %c0_98 = arith.constant 0 : index
    %c0_99 = arith.constant 0 : index
    %290 = vector.load %arg7[%c0_98, %c0_99] : memref<1x32xf32, #tpu.memory_space<vmem>>, vector<1x32xf32>
    %291 = vector.broadcast %290 : vector<1x32xf32> to vector<8x32xf32>
    %292 = arith.addf %289, %291 : vector<8x32xf32>
    %c0_100 = arith.constant 0 : index
    %c0_101 = arith.constant 0 : index
    %293 = vector.load %arg8[%c0_100, %c0_101] : memref<8x32xf32, #tpu.memory_space<vmem>>, vector<8x32xf32>
    tpu.vector_store %arg8[%c0_100, %c0_101], %292 {strides = array<i32>} : memref<8x32xf32, #tpu.memory_space<vmem>>, vector<8x32xf32>,
    return
  }
}

</mosaic_0001>

<llo_original>
// kernel: projector_forward.1
$region0: #{projector_forward.1}
  #allocation0 [shape = 'u32[]', space=smem, size = 0x4, offset = 0x4, fixed_abs, tag = 'smem constant byte address 0x4 - core index']
  #allocation1 [shape = 'u32[144,128]{1,0:T(1,128)}', space=vmem, size = 0x12000, scoped, tag = 'internal scratch']
  %s0 = inlined_call_operand.vmem [shape: bf16[64,64], index: 0, kind: input, shape index: {}]
  %s1 = inlined_call_operand.vmem [shape: bf16[64,512], index: 1, kind: input, shape index: {}]
  %s2 = inlined_call_operand.hbm [shape: f32[128,512], index: 2, kind: input, shape index: {}]
  %s3 = inlined_call_operand.vmem [shape: f32[1,512], index: 3, kind: input, shape index: {}]
  %s4 = inlined_call_operand.vmem [shape: f32[128,128], index: 4, kind: input, shape index: {}]
  %s5 = inlined_call_operand.vmem [shape: f32[1,128], index: 5, kind: input, shape index: {}]
  %s6 = inlined_call_operand.vmem [shape: f32[128,32], index: 6, kind: input, shape index: {}]
  %s7 = inlined_call_operand.vmem [shape: f32[1,32], index: 7, kind: input, shape index: {}]
  %s8 = inlined_call_operand.vmem [shape: f32[8,32], index: 8, kind: output, shape index: {}]
  %s9 = sld [smem:[#allocation0]]
  $region46: #{projector_forward.1} parent=0
    _
  %s11 = ssub.s32 1, %s9
  %s12 = scalar_select 0, %s11, %s9
  $region1: #{projector_forward.1} parent=0
    #allocation2 [shape = 'u8[262144]{0}', space=vmem, size = 0x40000, scoped, tag = 'input window, operand 2, single buffered']
    #allocation3 [shape = 's32[1]{0}', space=sflag, size = 0x4, scoped, tag = 'scoped memory for projector_forward.1']
    %13 = vsyncpa [#allocation3], 0
    // Predicated region
    $region2: #{projector_forward.1} parent=1 // pred_check
      _
    $region3: #{projector_forward.1} parent=1 // pred_check_branch
      %15 = sbr.rel (0) target = $region5
    $region4: #{projector_forward.1} parent=1 // pred_region
      _
    $region5: #{projector_forward.1} parent=1 // pred_fallthru
      _
    // Predicated region
    $region6: #{projector_forward.1} parent=1 // pred_check
      _
    $region7: #{projector_forward.1} parent=1 // pred_check_branch
      %17 = sbr.rel (0) target = $region9
    $region8: #{projector_forward.1} parent=1 // pred_region
      _
    $region9: #{projector_forward.1} parent=1 // pred_fallthru
      _
    // Predicated region
    $region10: #{projector_forward.1} parent=1 // pred_check
      _
    $region11: #{projector_forward.1} parent=1 // pred_check_branch
      %19 = sbr.rel (0) target = $region13
    $region12: #{projector_forward.1} parent=1 // pred_region
      %s21 = ssub.s32 8192, 8192
      %22 = vsyncadd [#allocation3], %s21
      %s23 = sshll.u32 [#allocation2], 4
      %s24 = int_to_ptr.vmem [resolvable:$true] %s23
      %29 = dma.hbm_to_vmem [thread:$0]  %s2, 8192, %s24, [#allocation3], 512, 512, 32
    $region13: #{projector_forward.1} parent=1 // pred_fallthru
      _
    // Predicated region
    $region14: #{projector_forward.1} parent=1 // pred_check
      _
    $region15: #{projector_forward.1} parent=1 // pred_check_branch
      %31 = sbr.rel (0) target = $region17
    $region16: #{projector_forward.1} parent=1 // pred_region
      _
    $region17: #{projector_forward.1} parent=1 // pred_fallthru
      _
    // Predicated region
    $region18: #{projector_forward.1} parent=1 // pred_check
      _
    $region19: #{projector_forward.1} parent=1 // pred_check_branch
      %33 = sbr.rel (0) target = $region21
    $region20: #{projector_forward.1} parent=1 // pred_region
      _
    $region21: #{projector_forward.1} parent=1 // pred_fallthru
      _
    // Predicated region
    $region22: #{projector_forward.1} parent=1 // pred_check
      _
    $region23: #{projector_forward.1} parent=1 // pred_check_branch
      %35 = sbr.rel (0) target = $region25
    $region24: #{projector_forward.1} parent=1 // pred_region
      _
    $region25: #{projector_forward.1} parent=1 // pred_fallthru
      _
    // Predicated region
    $region26: #{projector_forward.1} parent=1 // pred_check
      _
    $region27: #{projector_forward.1} parent=1 // pred_check_branch
      %37 = sbr.rel (0) target = $region29
    $region28: #{projector_forward.1} parent=1 // pred_region
      _
    $region29: #{projector_forward.1} parent=1 // pred_fallthru
      _
    // Predicated region
    $region30: #{projector_forward.1} parent=1 // pred_check
      _
    $region31: #{projector_forward.1} parent=1 // pred_check_branch
      %39 = sbr.rel (0) target = $region33
    $region32: #{projector_forward.1} parent=1 // pred_region
      _
    $region33: #{projector_forward.1} parent=1 // pred_fallthru
      _
    // Predicated region
    $region34: #{projector_forward.1} parent=1 // pred_check
      _
    $region35: #{projector_forward.1} parent=1 // pred_check_branch
      %41 = sbr.rel (0) target = $region37
    $region36: #{projector_forward.1} parent=1 // pred_region
      %42 = dma.done [#allocation3], 8192
    $region37: #{projector_forward.1} parent=1 // pred_fallthru
      _
    %v44 = vld [vmem:[%s0] sm:$0xf]
    %v45 = vld [vmem:[%s0 + $0x4] sm:$0xf]
    %v46 = vld [vmem:[%s0 + $0x8] sm:$0xf]
    %v47 = vld [vmem:[%s0 + $0xc] sm:$0xf]
    %v48 = vld [vmem:[%s0 + $0x10] sm:$0xf]
    %v49 = vld [vmem:[%s0 + $0x14] sm:$0xf]
    %v50 = vld [vmem:[%s0 + $0x18] sm:$0xf]
    %v51 = vld [vmem:[%s0 + $0x1c] sm:$0xf]
    %v52 = vld [vmem:[%s1] sm:$0xff]
    %v53 = vld [vmem:[%s1 + $0x8] sm:$0xff]
    %v54 = vld [vmem:[%s1 + $0x10] sm:$0xff]
    %v55 = vld [vmem:[%s1 + $0x18] sm:$0xff]
    %v56 = vld [vmem:[%s1 + $0x20] sm:$0xff]
    %v57 = vld [vmem:[%s1 + $0x28] sm:$0xff]
    %v58 = vld [vmem:[%s1 + $0x30] sm:$0xff]
    %v59 = vld [vmem:[%s1 + $0x38] sm:$0xff]
    %v60 = vld [vmem:[%s1 + $0x40] sm:$0xff]
    %v61 = vld [vmem:[%s1 + $0x48] sm:$0xff]
    %v62 = vld [vmem:[%s1 + $0x50] sm:$0xff]
    %v63 = vld [vmem:[%s1 + $0x58] sm:$0xff]
    %v64 = vld [vmem:[%s1 + $0x60] sm:$0xff]
    %v65 = vld [vmem:[%s1 + $0x68] sm:$0xff]
    %v66 = vld [vmem:[%s1 + $0x70] sm:$0xff]
    %v67 = vld [vmem:[%s1 + $0x78] sm:$0xff]
    %v68 = vld [vmem:[%s3] sm:$0xf]
    %v70 = vlaneseq
    %v71 = vshrl.u32 %v70, 7
    %v72 = vsub.s32 0, %v71
    %v73 = vrot.slane %v68, %v72
    %v74 = vlaneseq
    %v75 = vshrl.u32 %v74, 7
    %v76 = vsub.s32 1, %v75
    %v77 = vrot.slane %v68, %v76
    %v78 = vlaneseq
    %v79 = vshrl.u32 %v78, 7
    %v80 = vsub.s32 2, %v79
    %v81 = vrot.slane %v68, %v80
    %v82 = vlaneseq
    %v83 = vshrl.u32 %v82, 7
    %v84 = vsub.s32 3, %v83
    %v85 = vrot.slane %v68, %v84
    %v98 = vunpack.c.l.b16 %v44
    %v99 = vunpack.c.l.b16 %v45
    %v100 = vunpack.c.l.b16 %v46
    %v101 = vunpack.c.l.b16 %v47
    %v102 = vunpack.c.l.b16 %v48
    %v103 = vunpack.c.l.b16 %v49
    %v104 = vunpack.c.l.b16 %v50
    %v105 = vunpack.c.l.b16 %v51
    %v106 = vpack.c.b16 %v99, %v98
    %v107 = vpack.c.b16 %v101, %v100
    %v108 = vpack.c.b16 %v103, %v102
    %v109 = vpack.c.b16 %v105, %v104
    %v126 = vunpack.c.l.b16 %v52
    %v127 = vunpack.c.h.b16 %v52
    %v128 = vunpack.c.l.b16 %v53
    %v129 = vunpack.c.h.b16 %v53
    %v130 = vunpack.c.l.b16 %v54
    %v131 = vunpack.c.h.b16 %v54
    %v132 = vunpack.c.l.b16 %v55
    %v133 = vunpack.c.h.b16 %v55
    %v134 = vunpack.c.l.b16 %v56
    %v135 = vunpack.c.h.b16 %v56
    %v136 = vunpack.c.l.b16 %v57
    %v137 = vunpack.c.h.b16 %v57
    %v138 = vunpack.c.l.b16 %v58
    %v139 = vunpack.c.h.b16 %v58
    %v140 = vunpack.c.l.b16 %v59
    %v141 = vunpack.c.h.b16 %v59
    %v142 = vunpack.c.l.b16 %v60
    %v143 = vunpack.c.h.b16 %v60
    %v144 = vunpack.c.l.b16 %v61
    %v145 = vunpack.c.h.b16 %v61
    %v146 = vunpack.c.l.b16 %v62
    %v147 = vunpack.c.h.b16 %v62
    %v148 = vunpack.c.l.b16 %v63
    %v149 = vunpack.c.h.b16 %v63
    %v150 = vunpack.c.l.b16 %v64
    %v151 = vunpack.c.h.b16 %v64
    %v152 = vunpack.c.l.b16 %v65
    %v153 = vunpack.c.h.b16 %v65
    %v154 = vunpack.c.l.b16 %v66
    %v155 = vunpack.c.h.b16 %v66
    %v156 = vunpack.c.l.b16 %v67
    %v157 = vunpack.c.h.b16 %v67
    %v158 = vpack.c.b16 %v130, %v126
    %v159 = vpack.c.b16 %v131, %v127
    %v160 = vpack.c.b16 %v132, %v128
    %v161 = vpack.c.b16 %v133, %v129
    %v162 = vpack.c.b16 %v138, %v134
    %v163 = vpack.c.b16 %v139, %v135
    %v164 = vpack.c.b16 %v140, %v136
    %v165 = vpack.c.b16 %v141, %v137
    %v166 = vpack.c.b16 %v146, %v142
    %v167 = vpack.c.b16 %v147, %v143
    %v168 = vpack.c.b16 %v148, %v144
    %v169 = vpack.c.b16 %v149, %v145
    %v170 = vpack.c.b16 %v154, %v150
    %v171 = vpack.c.b16 %v155, %v151
    %v172 = vpack.c.b16 %v156, %v152
    %v173 = vpack.c.b16 %v157, %v153
    %vm190 = vcmask 523264
    %v192 = vsel %vm190, %v106, 0
    %v195 = vsel %vm190, %v107, 0
    %v198 = vsel %vm190, %v108, 0
    %v201 = vsel %vm190, %v109, 0
    %203 = vmatprep.subr.bf16.mxu0 %v159
    %204 = vmatpush1.bf16.msra.mxu0 %v158
    %205 = vmatprep.subr.bf16.mxu0 %v163
    %206 = vmatpush1.bf16.msra.mxu0 %v162
    %207 = vmatprep.subr.bf16.mxu0 %v167
    %208 = vmatpush1.bf16.msra.mxu0 %v166
    %209 = vmatprep.subr.bf16.mxu0 %v171
    %210 = vmatpush1.bf16.msra.mxu0 %v170
    %211 = vmatprep.subr.bf16.mxu0 0
    %212 = vmatpush1.bf16.msra.mxu0 0
    %213 = vmatprep.subr.bf16.mxu0 0
    %214 = vmatpush1.bf16.msra.mxu0 0
    %215 = vmatprep.subr.bf16.mxu0 0
    %216 = vmatpush1.bf16.msra.mxu0 0
    %217 = vmatprep.subr.bf16.mxu0 0
    %218 = vmatpush1.bf16.msra.mxu0 0
    %219 = vmatprep.subr.bf16.mxu0 0
    %220 = vmatpush1.bf16.msra.mxu0 0
    %221 = vmatprep.subr.bf16.mxu0 0
    %222 = vmatpush1.bf16.msra.mxu0 0
    %223 = vmatprep.subr.bf16.mxu0 0
    %224 = vmatpush1.bf16.msra.mxu0 0
    %225 = vmatprep.subr.bf16.mxu0 0
    %226 = vmatpush1.bf16.msra.mxu0 0
    %227 = vmatprep.subr.bf16.mxu0 0
    %228 = vmatpush1.bf16.msra.mxu0 0
    %229 = vmatprep.subr.bf16.mxu0 0
    %230 = vmatpush1.bf16.msra.mxu0 0
    %231 = vmatprep.subr.bf16.mxu0 0
    %232 = vmatpush1.bf16.msra.mxu0 0
    %233 = vmatprep.subr.bf16.mxu0 0
    %234 = vmatpush1.bf16.msra.mxu0 0
    %235 = vmatprep.mubr.bf16.mxu0 0
    %236 = vmatmul.mubr.bf16.gmra.mrb[0].mxu0 %v192
    %v237 = vpop.f32.mrb[0].mxu0
    %v238 = vadd.f32 %v73, %v237
    %v239 = vpop.f32.mrb[0].mxu0
    %v240 = vadd.f32 %v77, %v239
    %v241 = vpop.f32.mrb[0].mxu0
    %v242 = vadd.f32 %v73, %v241
    %v243 = vpop.f32.mrb[0].mxu0
    %v244 = vadd.f32 %v77, %v243
    %245 = vmatprep.mubr.bf16.mxu0 0
    %246 = vmatmul.mubr.bf16.gmra.mrb[0].mxu0 %v195
    %v247 = vpop.f32.mrb[0].mxu0
    %v248 = vadd.f32 %v73, %v247
    %v249 = vpop.f32.mrb[0].mxu0
    %v250 = vadd.f32 %v77, %v249
    %v251 = vpop.f32.mrb[0].mxu0
    %v252 = vadd.f32 %v73, %v251
    %v253 = vpop.f32.mrb[0].mxu0
    %v254 = vadd.f32 %v77, %v253
    %255 = vmatprep.mubr.bf16.mxu0 0
    %256 = vmatmul.mubr.bf16.gmra.mrb[0].mxu0 %v198
    %v257 = vpop.f32.mrb[0].mxu0
    %v258 = vadd.f32 %v73, %v257
    %v259 = vpop.f32.mrb[0].mxu0
    %v260 = vadd.f32 %v77, %v259
    %v261 = vpop.f32.mrb[0].mxu0
    %v262 = vadd.f32 %v73, %v261
    %v263 = vpop.f32.mrb[0].mxu0
    %v264 = vadd.f32 %v77, %v263
    %265 = vmatprep.mubr.bf16.mxu0 0
    %266 = vmatmul.mubr.bf16.gmra.mrb[0].mxu0 %v201
    %v267 = vpop.f32.mrb[0].mxu0
    %v268 = vadd.f32 %v73, %v267
    %v269 = vpop.f32.mrb[0].mxu0
    %v270 = vadd.f32 %v77, %v269
    %v271 = vpop.f32.mrb[0].mxu0
    %v272 = vadd.f32 %v73, %v271
    %v273 = vpop.f32.mrb[0].mxu0
    %v274 = vadd.f32 %v77, %v273
    %275 = vdwg.mxu0
    %276 = vmatprep.subr.bf16.mxu0 %v161
    %277 = vmatpush1.bf16.msra.mxu0 %v160
    %278 = vmatprep.subr.bf16.mxu0 %v165
    %279 = vmatpush1.bf16.msra.mxu0 %v164
    %280 = vmatprep.subr.bf16.mxu0 %v169
    %281 = vmatpush1.bf16.msra.mxu0 %v168
    %282 = vmatprep.subr.bf16.mxu0 %v173
    %283 = vmatpush1.bf16.msra.mxu0 %v172
    %284 = vmatprep.subr.bf16.mxu0 0
    %285 = vmatpush1.bf16.msra.mxu0 0
    %286 = vmatprep.subr.bf16.mxu0 0
    %287 = vmatpush1.bf16.msra.mxu0 0
    %288 = vmatprep.subr.bf16.mxu0 0
    %289 = vmatpush1.bf16.msra.mxu0 0
    %290 = vmatprep.subr.bf16.mxu0 0
    %291 = vmatpush1.bf16.msra.mxu0 0
    %292 = vmatprep.subr.bf16.mxu0 0
    %293 = vmatpush1.bf16.msra.mxu0 0
    %294 = vmatprep.subr.bf16.mxu0 0
    %295 = vmatpush1.bf16.msra.mxu0 0
    %296 = vmatprep.subr.bf16.mxu0 0
    %297 = vmatpush1.bf16.msra.mxu0 0
    %298 = vmatprep.subr.bf16.mxu0 0
    %299 = vmatpush1.bf16.msra.mxu0 0
    %300 = vmatprep.subr.bf16.mxu0 0
    %301 = vmatpush1.bf16.msra.mxu0 0
    %302 = vmatprep.subr.bf16.mxu0 0
    %303 = vmatpush1.bf16.msra.mxu0 0
    %304 = vmatprep.subr.bf16.mxu0 0
    %305 = vmatpush1.bf16.msra.mxu0 0
    %306 = vmatprep.subr.bf16.mxu0 0
    %307 = vmatpush1.bf16.msra.mxu0 0
    %308 = vmatprep.mubr.bf16.mxu0 0
    %309 = vmatmul.mubr.bf16.gmra.mrb[0].mxu0 %v192
    %v310 = vpop.f32.mrb[0].mxu0
    %v311 = vadd.f32 %v81, %v310
    %v312 = vpop.f32.mrb[0].mxu0
    %v313 = vadd.f32 %v85, %v312
    %v314 = vpop.f32.mrb[0].mxu0
    %v315 = vadd.f32 %v81, %v314
    %v316 = vpop.f32.mrb[0].mxu0
    %v317 = vadd.f32 %v85, %v316
    %318 = vmatprep.mubr.bf16.mxu0 0
    %319 = vmatmul.mubr.bf16.gmra.mrb[0].mxu0 %v195
    %v320 = vpop.f32.mrb[0].mxu0
    %v321 = vadd.f32 %v81, %v320
    %v322 = vpop.f32.mrb[0].mxu0
    %v323 = vadd.f32 %v85, %v322
    %v324 = vpop.f32.mrb[0].mxu0
    %v325 = vadd.f32 %v81, %v324
    %v326 = vpop.f32.mrb[0].mxu0
    %v327 = vadd.f32 %v85, %v326
    %328 = vmatprep.mubr.bf16.mxu0 0
    %329 = vmatmul.mubr.bf16.gmra.mrb[0].mxu0 %v198
    %v330 = vpop.f32.mrb[0].mxu0
    %v331 = vadd.f32 %v81, %v330
    %v332 = vpop.f32.mrb[0].mxu0
    %v333 = vadd.f32 %v85, %v332
    %v334 = vpop.f32.mrb[0].mxu0
    %v335 = vadd.f32 %v81, %v334
    %v336 = vpop.f32.mrb[0].mxu0
    %v337 = vadd.f32 %v85, %v336
    %338 = vmatprep.mubr.bf16.mxu0 0
    %339 = vmatmul.mubr.bf16.gmra.mrb[0].mxu0 %v201
    %v340 = vpop.f32.mrb[0].mxu0
    %v341 = vadd.f32 %v81, %v340
    %v342 = vpop.f32.mrb[0].mxu0
    %v343 = vadd.f32 %v85, %v342
    %v344 = vpop.f32.mrb[0].mxu0
    %v345 = vadd.f32 %v81, %v344
    %v346 = vpop.f32.mrb[0].mxu0
    %v347 = vadd.f32 %v85, %v346
    %348 = vdwg.mxu0
    %v349 = vld [vmem:[#allocation2] sm:$0xff]
    %v350 = vld [vmem:[#allocation2 + $0x8] sm:$0xff]
    %v351 = vld [vmem:[#allocation2 + $0x10] sm:$0xff]
    %v352 = vld [vmem:[#allocation2 + $0x18] sm:$0xff]
    %v353 = vld [vmem:[#allocation2 + $0x20] sm:$0xff]
    %v354 = vld [vmem:[#allocation2 + $0x28] sm:$0xff]
    %v355 = vld [vmem:[#allocation2 + $0x30] sm:$0xff]
    %v356 = vld [vmem:[#allocation2 + $0x38] sm:$0xff]
    %v357 = vld [vmem:[#allocation2 + $0x40] sm:$0xff]
    %v358 = vld [vmem:[#allocation2 + $0x48] sm:$0xff]
    %v359 = vld [vmem:[#allocation2 + $0x50] sm:$0xff]
    %v360 = vld [vmem:[#allocation2 + $0x58] sm:$0xff]
    %v361 = vld [vmem:[#allocation2 + $0x60] sm:$0xff]
    %v362 = vld [vmem:[#allocation2 + $0x68] sm:$0xff]
    %v363 = vld [vmem:[#allocation2 + $0x70] sm:$0xff]
    %v364 = vld [vmem:[#allocation2 + $0x78] sm:$0xff]
    %v365 = vld [vmem:[#allocation2 + $0x80] sm:$0xff]
    %v366 = vld [vmem:[#allocation2 + $0x88] sm:$0xff]
    %v367 = vld [vmem:[#allocation2 + $0x90] sm:$0xff]
    %v368 = vld [vmem:[#allocation2 + $0x98] sm:$0xff]
    %v369 = vld [vmem:[#allocation2 + $0xa0] sm:$0xff]
    %v370 = vld [vmem:[#allocation2 + $0xa8] sm:$0xff]
    %v371 = vld [vmem:[#allocation2 + $0xb0] sm:$0xff]
    %v372 = vld [vmem:[#allocation2 + $0xb8] sm:$0xff]
    %v373 = vld [vmem:[#allocation2 + $0xc0] sm:$0xff]
    %v374 = vld [vmem:[#allocation2 + $0xc8] sm:$0xff]
    %v375 = vld [vmem:[#allocation2 + $0xd0] sm:$0xff]
    %v376 = vld [vmem:[#allocation2 + $0xd8] sm:$0xff]
    %v377 = vld [vmem:[#allocation2 + $0xe0] sm:$0xff]
    %v378 = vld [vmem:[#allocation2 + $0xe8] sm:$0xff]
    %v379 = vld [vmem:[#allocation2 + $0xf0] sm:$0xff]
    %v380 = vld [vmem:[#allocation2 + $0xf8] sm:$0xff]
    %v381 = vld [vmem:[#allocation2 + $0x100] sm:$0xff]
    %v382 = vld [vmem:[#allocation2 + $0x108] sm:$0xff]
    %v383 = vld [vmem:[#allocation2 + $0x110] sm:$0xff]
    %v384 = vld [vmem:[#allocation2 + $0x118] sm:$0xff]
    %v385 = vld [vmem:[#allocation2 + $0x120] sm:$0xff]
    %v386 = vld [vmem:[#allocation2 + $0x128] sm:$0xff]
    %v387 = vld [vmem:[#allocation2 + $0x130] sm:$0xff]
    %v388 = vld [vmem:[#allocation2 + $0x138] sm:$0xff]
    %v389 = vld [vmem:[#allocation2 + $0x140] sm:$0xff]
    %v390 = vld [vmem:[#allocation2 + $0x148] sm:$0xff]
    %v391 = vld [vmem:[#allocation2 + $0x150] sm:$0xff]
    %v392 = vld [vmem:[#allocation2 + $0x158] sm:$0xff]
    %v393 = vld [vmem:[#allocation2 + $0x160] sm:$0xff]
    %v394 = vld [vmem:[#allocation2 + $0x168] sm:$0xff]
    %v395 = vld [vmem:[#allocation2 + $0x170] sm:$0xff]
    %v396 = vld [vmem:[#allocation2 + $0x178] sm:$0xff]
    %v397 = vld [vmem:[#allocation2 + $0x180] sm:$0xff]
    %v398 = vld [vmem:[#allocation2 + $0x188] sm:$0xff]
    %v399 = vld [vmem:[#allocation2 + $0x190] sm:$0xff]
    %v400 = vld [vmem:[#allocation2 + $0x198] sm:$0xff]
    %v401 = vld [vmem:[#allocation2 + $0x1a0] sm:$0xff]
    %v402 = vld [vmem:[#allocation2 + $0x1a8] sm:$0xff]
    %v403 = vld [vmem:[#allocation2 + $0x1b0] sm:$0xff]
    %v404 = vld [vmem:[#allocation2 + $0x1b8] sm:$0xff]
    %v405 = vld [vmem:[#allocation2 + $0x1c0] sm:$0xff]
    %v406 = vld [vmem:[#allocation2 + $0x1c8] sm:$0xff]
    %v407 = vld [vmem:[#allocation2 + $0x1d0] sm:$0xff]
    %v408 = vld [vmem:[#allocation2 + $0x1d8] sm:$0xff]
    %v409 = vld [vmem:[#allocation2 + $0x1e0] sm:$0xff]
    %v410 = vld [vmem:[#allocation2 + $0x1e8] sm:$0xff]
    %v411 = vld [vmem:[#allocation2 + $0x1f0] sm:$0xff]
    %v412 = vld [vmem:[#allocation2 + $0x1f8] sm:$0xff]
    %413 = vmatprep.subr.mxu0 %v350
    %414 = vmatpush1.msra.mxu0 %v349
    %415 = vmatprep.subr.mxu0 %v354
    %416 = vmatpush1.msra.mxu0 %v353
    %417 = vmatprep.subr.mxu0 %v358
    %418 = vmatpush1.msra.mxu0 %v357
    %419 = vmatprep.subr.mxu0 %v362
    %420 = vmatpush1.msra.mxu0 %v361
    %421 = vmatprep.subr.mxu0 %v366
    %422 = vmatpush1.msra.mxu0 %v365
    %423 = vmatprep.subr.mxu0 %v370
    %424 = vmatpush1.msra.mxu0 %v369
    %425 = vmatprep.subr.mxu0 %v374
    %426 = vmatpush1.msra.mxu0 %v373
    %427 = vmatprep.subr.mxu0 %v378
    %428 = vmatpush1.msra.mxu0 %v377
    %429 = vmatprep.subr.mxu0 %v382
    %430 = vmatpush1.msra.mxu0 %v381
    %431 = vmatprep.subr.mxu0 %v386
    %432 = vmatpush1.msra.mxu0 %v385
    %433 = vmatprep.subr.mxu0 %v390
    %434 = vmatpush1.msra.mxu0 %v389
    %435 = vmatprep.subr.mxu0 %v394
    %436 = vmatpush1.msra.mxu0 %v393
    %437 = vmatprep.subr.mxu0 %v398
    %438 = vmatpush1.msra.mxu0 %v397
    %439 = vmatprep.subr.mxu0 %v402
    %440 = vmatpush1.msra.mxu0 %v401
    %441 = vmatprep.subr.mxu0 %v406
    %442 = vmatpush1.msra.mxu0 %v405
    %443 = vmatprep.subr.mxu0 %v410
    %444 = vmatpush1.msra.mxu0 %v409
    %445 = vmatprep.subr.mxu0 0.0
    %446 = vmatpush1.msra.mxu0 0.0
    %447 = vmatprep.subr.mxu0 0.0
    %448 = vmatpush1.msra.mxu0 0.0
    %449 = vmatprep.subr.mxu0 0.0
    %450 = vmatpush1.msra.mxu0 0.0
    %451 = vmatprep.subr.mxu0 0.0
    %452 = vmatpush1.msra.mxu0 0.0
    %453 = vmatprep.subr.mxu0 0.0
    %454 = vmatpush1.msra.mxu0 0.0
    %455 = vmatprep.subr.mxu0 0.0
    %456 = vmatpush1.msra.mxu0 0.0
    %457 = vmatprep.subr.mxu0 0.0
    %458 = vmatpush1.msra.mxu0 0.0
    %459 = vmatprep.subr.mxu0 0.0
    %460 = vmatpush1.msra.mxu0 0.0
    %461 = vmatprep.subr.mxu0 0.0
    %462 = vmatpush1.msra.mxu0 0.0
    %463 = vmatprep.subr.mxu0 0.0
    %464 = vmatpush1.msra.mxu0 0.0
    %465 = vmatprep.subr.mxu0 0.0
    %466 = vmatpush1.msra.mxu0 0.0
    %467 = vmatprep.subr.mxu0 0.0
    %468 = vmatpush1.msra.mxu0 0.0
    %469 = vmatprep.subr.mxu0 0.0
    %470 = vmatpush1.msra.mxu0 0.0
    %471 = vmatprep.subr.mxu0 0.0
    %472 = vmatpush1.msra.mxu0 0.0
    %473 = vmatprep.subr.mxu0 0.0
    %474 = vmatpush1.msra.mxu0 0.0
    %475 = vmatprep.subr.mxu0 0.0
    %476 = vmatpush1.msra.mxu0 0.0
    %477 = vmatprep.mubr.f32.mxu0 0.0
    %478 = vmatmul.mubr.f32.gmra.mrb[0].mxu0 0.0
    %v479 = vpop.f32.mrb[0].mxu0
    %v480 = vadd.f32 0.0, %v479
    %v481 = vpop.f32.mrb[0].mxu0
    %v482 = vadd.f32 0.0, %v481
    %483 = vdwg.mxu0
    %484 = vmatprep.subr.mxu0 %v352
    %485 = vmatpush1.msra.mxu0 %v351
    %486 = vmatprep.subr.mxu0 %v356
    %487 = vmatpush1.msra.mxu0 %v355
    %488 = vmatprep.subr.mxu0 %v360
    %489 = vmatpush1.msra.mxu0 %v359
    %490 = vmatprep.subr.mxu0 %v364
    %491 = vmatpush1.msra.mxu0 %v363
    %492 = vmatprep.subr.mxu0 %v368
    %493 = vmatpush1.msra.mxu0 %v367
    %494 = vmatprep.subr.mxu0 %v372
    %495 = vmatpush1.msra.mxu0 %v371
    %496 = vmatprep.subr.mxu0 %v376
    %497 = vmatpush1.msra.mxu0 %v375
    %498 = vmatprep.subr.mxu0 %v380
    %499 = vmatpush1.msra.mxu0 %v379
    %500 = vmatprep.subr.mxu0 %v384
    %501 = vmatpush1.msra.mxu0 %v383
    %502 = vmatprep.subr.mxu0 %v388
    %503 = vmatpush1.msra.mxu0 %v387
    %504 = vmatprep.subr.mxu0 %v392
    %505 = vmatpush1.msra.mxu0 %v391
    %506 = vmatprep.subr.mxu0 %v396
    %507 = vmatpush1.msra.mxu0 %v395
    %508 = vmatprep.subr.mxu0 %v400
    %509 = vmatpush1.msra.mxu0 %v399
    %510 = vmatprep.subr.mxu0 %v404
    %511 = vmatpush1.msra.mxu0 %v403
    %512 = vmatprep.subr.mxu0 %v408
    %513 = vmatpush1.msra.mxu0 %v407
    %514 = vmatprep.subr.mxu0 %v412
    %515 = vmatpush1.msra.mxu0 %v411
    %516 = vmatprep.subr.mxu0 0.0
    %517 = vmatpush1.msra.mxu0 0.0
    %518 = vmatprep.subr.mxu0 0.0
    %519 = vmatpush1.msra.mxu0 0.0
    %520 = vmatprep.subr.mxu0 0.0
    %521 = vmatpush1.msra.mxu0 0.0
    %522 = vmatprep.subr.mxu0 0.0
    %523 = vmatpush1.msra.mxu0 0.0
    %524 = vmatprep.subr.mxu0 0.0
    %525 = vmatpush1.msra.mxu0 0.0
    %526 = vmatprep.subr.mxu0 0.0
    %527 = vmatpush1.msra.mxu0 0.0
    %528 = vmatprep.subr.mxu0 0.0
    %529 = vmatpush1.msra.mxu0 0.0
    %530 = vmatprep.subr.mxu0 0.0
    %531 = vmatpush1.msra.mxu0 0.0
    %532 = vmatprep.subr.mxu0 0.0
    %533 = vmatpush1.msra.mxu0 0.0
    %534 = vmatprep.subr.mxu0 0.0
    %535 = vmatpush1.msra.mxu0 0.0
    %536 = vmatprep.subr.mxu0 0.0
    %537 = vmatpush1.msra.mxu0 0.0
    %538 = vmatprep.subr.mxu0 0.0
    %539 = vmatpush1.msra.mxu0 0.0
    %540 = vmatprep.subr.mxu0 0.0
    %541 = vmatpush1.msra.mxu0 0.0
    %542 = vmatprep.subr.mxu0 0.0
    %543 = vmatpush1.msra.mxu0 0.0
    %544 = vmatprep.subr.mxu0 0.0
    %545 = vmatpush1.msra.mxu0 0.0
    %546 = vmatprep.subr.mxu0 0.0
    %547 = vmatpush1.msra.mxu0 0.0
    %548 = vmatprep.mubr.f32.mxu0 0.0
    %549 = vmatmul.mubr.f32.gmra.mrb[0].mxu0 0.0
    %v550 = vpop.f32.mrb[0].mxu0
    %v551 = vadd.f32 0.0, %v550
    %v552 = vpop.f32.mrb[0].mxu0
    %v553 = vadd.f32 0.0, %v552
    %554 = vdwg.mxu0
    %v555 = vadd.f32 %v238, %v480
    %v556 = vadd.f32 %v240, %v482
    %v557 = vadd.f32 %v311, %v551
    %v558 = vadd.f32 %v313, %v553
    %v559 = vmul.f32 %v555, 0.5
    %v560 = vtanh.pop %v559
    %v561 = vmul.f32 %v560, 0.5
    %v562 = vadd.f32 %v561, 0.5
    %v563 = vmul.f32 %v556, 0.5
    %v564 = vtanh.pop %v563
    %v565 = vmul.f32 %v564, 0.5
    %v566 = vadd.f32 %v565, 0.5
    %v567 = vtanh.pop %v557
    %v568 = vmul.f32 %v558, 0.5
    %v569 = vtanh.pop %v568
    %v570 = vmul.f32 %v569, 0.5
    %v571 = vadd.f32 %v570, 0.5
    %v572 = vmul.f32 %v566, 0.0
    %v573 = vmul.f32 %v562, %v567
    %v574 = vadd.f32 %v572, %v573
    %v575 = vtanh.pop %v574
    %v576 = vmul.f32 %v571, %v575
    %577 = vmatprep.subr.mxu0 %v350
    %578 = vmatpush1.msra.mxu0 %v349
    %579 = vmatprep.subr.mxu0 %v354
    %580 = vmatpush1.msra.mxu0 %v353
    %581 = vmatprep.subr.mxu0 %v358
    %582 = vmatpush1.msra.mxu0 %v357
    %583 = vmatprep.subr.mxu0 %v362
    %584 = vmatpush1.msra.mxu0 %v361
    %585 = vmatprep.subr.mxu0 %v366
    %586 = vmatpush1.msra.mxu0 %v365
    %587 = vmatprep.subr.mxu0 %v370
    %588 = vmatpush1.msra.mxu0 %v369
    %589 = vmatprep.subr.mxu0 %v374
    %590 = vmatpush1.msra.mxu0 %v373
    %591 = vmatprep.subr.mxu0 %v378
    %592 = vmatpush1.msra.mxu0 %v377
    %593 = vmatprep.subr.mxu0 %v382
    %594 = vmatpush1.msra.mxu0 %v381
    %595 = vmatprep.subr.mxu0 %v386
    %596 = vmatpush1.msra.mxu0 %v385
    %597 = vmatprep.subr.mxu0 %v390
    %598 = vmatpush1.msra.mxu0 %v389
    %599 = vmatprep.subr.mxu0 %v394
    %600 = vmatpush1.msra.mxu0 %v393
    %601 = vmatprep.subr.mxu0 %v398
    %602 = vmatpush1.msra.mxu0 %v397
    %603 = vmatprep.subr.mxu0 %v402
    %604 = vmatpush1.msra.mxu0 %v401
    %605 = vmatprep.subr.mxu0 %v406
    %606 = vmatpush1.msra.mxu0 %v405
    %607 = vmatprep.subr.mxu0 %v410
    %608 = vmatpush1.msra.mxu0 %v409
    %609 = vmatprep.subr.mxu0 0.0
    %610 = vmatpush1.msra.mxu0 0.0
    %611 = vmatprep.subr.mxu0 0.0
    %612 = vmatpush1.msra.mxu0 0.0
    %613 = vmatprep.subr.mxu0 0.0
    %614 = vmatpush1.msra.mxu0 0.0
    %615 = vmatprep.subr.mxu0 0.0
    %616 = vmatpush1.msra.mxu0 0.0
    %617 = vmatprep.subr.mxu0 0.0
    %618 = vmatpush1.msra.mxu0 0.0
    %619 = vmatprep.subr.mxu0 0.0
    %620 = vmatpush1.msra.mxu0 0.0
    %621 = vmatprep.subr.mxu0 0.0
    %622 = vmatpush1.msra.mxu0 0.0
    %623 = vmatprep.subr.mxu0 0.0
    %624 = vmatpush1.msra.mxu0 0.0
    %625 = vmatprep.subr.mxu0 0.0
    %626 = vmatpush1.msra.mxu0 0.0
    %627 = vmatprep.subr.mxu0 0.0
    %628 = vmatpush1.msra.mxu0 0.0
    %629 = vmatprep.subr.mxu0 0.0
    %630 = vmatpush1.msra.mxu0 0.0
    %631 = vmatprep.subr.mxu0 0.0
    %632 = vmatpush1.msra.mxu0 0.0
    %633 = vmatprep.subr.mxu0 0.0
    %634 = vmatpush1.msra.mxu0 0.0
    %635 = vmatprep.subr.mxu0 0.0
    %636 = vmatpush1.msra.mxu0 0.0
    %637 = vmatprep.subr.mxu0 0.0
    %638 = vmatpush1.msra.mxu0 0.0
    %639 = vmatprep.subr.mxu0 0.0
    %640 = vmatpush1.msra.mxu0 0.0
    %641 = vmatprep.mubr.f32.mxu0 0.0
    %642 = vmatmul.mubr.f32.gmra.mrb[0].mxu0 %v576
    %v643 = vpop.f32.mrb[0].mxu0
    %v644 = vadd.f32 0.0, %v643
    %v645 = vpop.f32.mrb[0].mxu0
    %v646 = vadd.f32 0.0, %v645
    %647 = vdwg.mxu0
    %648 = vmatprep.subr.mxu0 %v352
    %649 = vmatpush1.msra.mxu0 %v351
    %650 = vmatprep.subr.mxu0 %v356
    %651 = vmatpush1.msra.mxu0 %v355
    %652 = vmatprep.subr.mxu0 %v360
    %653 = vmatpush1.msra.mxu0 %v359
    %654 = vmatprep.subr.mxu0 %v364
    %655 = vmatpush1.msra.mxu0 %v363
    %656 = vmatprep.subr.mxu0 %v368
    %657 = vmatpush1.msra.mxu0 %v367
    %658 = vmatprep.subr.mxu0 %v372
    %659 = vmatpush1.msra.mxu0 %v371
    %660 = vmatprep.subr.mxu0 %v376
    %661 = vmatpush1.msra.mxu0 %v375
    %662 = vmatprep.subr.mxu0 %v380
    %663 = vmatpush1.msra.mxu0 %v379
    %664 = vmatprep.subr.mxu0 %v384
    %665 = vmatpush1.msra.mxu0 %v383
    %666 = vmatprep.subr.mxu0 %v388
    %667 = vmatpush1.msra.mxu0 %v387
    %668 = vmatprep.subr.mxu0 %v392
    %669 = vmatpush1.msra.mxu0 %v391
    %670 = vmatprep.subr.mxu0 %v396
    %671 = vmatpush1.msra.mxu0 %v395
    %672 = vmatprep.subr.mxu0 %v400
    %673 = vmatpush1.msra.mxu0 %v399
    %674 = vmatprep.subr.mxu0 %v404
    %675 = vmatpush1.msra.mxu0 %v403
    %676 = vmatprep.subr.mxu0 %v408
    %677 = vmatpush1.msra.mxu0 %v407
    %678 = vmatprep.subr.mxu0 %v412
    %679 = vmatpush1.msra.mxu0 %v411
    %680 = vmatprep.subr.mxu0 0.0
    %681 = vmatpush1.msra.mxu0 0.0
    %682 = vmatprep.subr.mxu0 0.0
    %683 = vmatpush1.msra.mxu0 0.0
    %684 = vmatprep.subr.mxu0 0.0
    %685 = vmatpush1.msra.mxu0 0.0
    %686 = vmatprep.subr.mxu0 0.0
    %687 = vmatpush1.msra.mxu0 0.0
    %688 = vmatprep.subr.mxu0 0.0
    %689 = vmatpush1.msra.mxu0 0.0
    %690 = vmatprep.subr.mxu0 0.0
    %691 = vmatpush1.msra.mxu0 0.0
    %692 = vmatprep.subr.mxu0 0.0
    %693 = vmatpush1.msra.mxu0 0.0
    %694 = vmatprep.subr.mxu0 0.0
    %695 = vmatpush1.msra.mxu0 0.0
    %696 = vmatprep.subr.mxu0 0.0
    %697 = vmatpush1.msra.mxu0 0.0
    %698 = vmatprep.subr.mxu0 0.0
    %699 = vmatpush1.msra.mxu0 0.0
    %700 = vmatprep.subr.mxu0 0.0
    %701 = vmatpush1.msra.mxu0 0.0
    %702 = vmatprep.subr.mxu0 0.0
    %703 = vmatpush1.msra.mxu0 0.0
    %704 = vmatprep.subr.mxu0 0.0
    %705 = vmatpush1.msra.mxu0 0.0
    %706 = vmatprep.subr.mxu0 0.0
    %707 = vmatpush1.msra.mxu0 0.0
    %708 = vmatprep.subr.mxu0 0.0
    %709 = vmatpush1.msra.mxu0 0.0
    %710 = vmatprep.subr.mxu0 0.0
    %711 = vmatpush1.msra.mxu0 0.0
    %712 = vmatprep.mubr.f32.mxu0 0.0
    %713 = vmatmul.mubr.f32.gmra.mrb[0].mxu0 %v576
    %v714 = vpop.f32.mrb[0].mxu0
    %v715 = vadd.f32 0.0, %v714
    %v716 = vpop.f32.mrb[0].mxu0
    %v717 = vadd.f32 0.0, %v716
    %718 = vdwg.mxu0
    %v719 = vadd.f32 %v242, %v644
    %v720 = vadd.f32 %v244, %v646
    %v721 = vadd.f32 %v315, %v715
    %v722 = vadd.f32 %v317, %v717
    %v723 = vmul.f32 %v719, 0.5
    %v724 = vtanh.pop %v723
    %v725 = vmul.f32 %v724, 0.5
    %v726 = vadd.f32 %v725, 0.5
    %v727 = vmul.f32 %v720, 0.5
    %v728 = vtanh.pop %v727
    %v729 = vmul.f32 %v728, 0.5
    %v730 = vadd.f32 %v729, 0.5
    %v731 = vtanh.pop %v721
    %v732 = vmul.f32 %v722, 0.5
    %v733 = vtanh.pop %v732
    %v734 = vmul.f32 %v733, 0.5
    %v735 = vadd.f32 %v734, 0.5
    %v736 = vmul.f32 %v730, %v574
    %v737 = vmul.f32 %v726, %v731
    %v738 = vadd.f32 %v736, %v737
    %v739 = vtanh.pop %v738
    %v740 = vmul.f32 %v735, %v739
    %741 = vmatprep.subr.mxu0 %v350
    %742 = vmatpush1.msra.mxu0 %v349
    %743 = vmatprep.subr.mxu0 %v354
    %744 = vmatpush1.msra.mxu0 %v353
    %745 = vmatprep.subr.mxu0 %v358
    %746 = vmatpush1.msra.mxu0 %v357
    %747 = vmatprep.subr.mxu0 %v362
    %748 = vmatpush1.msra.mxu0 %v361
    %749 = vmatprep.subr.mxu0 %v366
    %750 = vmatpush1.msra.mxu0 %v365
    %751 = vmatprep.subr.mxu0 %v370
    %752 = vmatpush1.msra.mxu0 %v369
    %753 = vmatprep.subr.mxu0 %v374
    %754 = vmatpush1.msra.mxu0 %v373
    %755 = vmatprep.subr.mxu0 %v378
    %756 = vmatpush1.msra.mxu0 %v377
    %757 = vmatprep.subr.mxu0 %v382
    %758 = vmatpush1.msra.mxu0 %v381
    %759 = vmatprep.subr.mxu0 %v386
    %760 = vmatpush1.msra.mxu0 %v385
    %761 = vmatprep.subr.mxu0 %v390
    %762 = vmatpush1.msra.mxu0 %v389
    %763 = vmatprep.subr.mxu0 %v394
    %764 = vmatpush1.msra.mxu0 %v393
    %765 = vmatprep.subr.mxu0 %v398
    %766 = vmatpush1.msra.mxu0 %v397
    %767 = vmatprep.subr.mxu0 %v402
    %768 = vmatpush1.msra.mxu0 %v401
    %769 = vmatprep.subr.mxu0 %v406
    %770 = vmatpush1.msra.mxu0 %v405
    %771 = vmatprep.subr.mxu0 %v410
    %772 = vmatpush1.msra.mxu0 %v409
    %773 = vmatprep.subr.mxu0 0.0
    %774 = vmatpush1.msra.mxu0 0.0
    %775 = vmatprep.subr.mxu0 0.0
    %776 = vmatpush1.msra.mxu0 0.0
    %777 = vmatprep.subr.mxu0 0.0
    %778 = vmatpush1.msra.mxu0 0.0
    %779 = vmatprep.subr.mxu0 0.0
    %780 = vmatpush1.msra.mxu0 0.0
    %781 = vmatprep.subr.mxu0 0.0
    %782 = vmatpush1.msra.mxu0 0.0
    %783 = vmatprep.subr.mxu0 0.0
    %784 = vmatpush1.msra.mxu0 0.0
    %785 = vmatprep.subr.mxu0 0.0
    %786 = vmatpush1.msra.mxu0 0.0
    %787 = vmatprep.subr.mxu0 0.0
    %788 = vmatpush1.msra.mxu0 0.0
    %789 = vmatprep.subr.mxu0 0.0
    %790 = vmatpush1.msra.mxu0 0.0
    %791 = vmatprep.subr.mxu0 0.0
    %792 = vmatpush1.msra.mxu0 0.0
    %793 = vmatprep.subr.mxu0 0.0
    %794 = vmatpush1.msra.mxu0 0.0
    %795 = vmatprep.subr.mxu0 0.0
    %796 = vmatpush1.msra.mxu0 0.0
    %797 = vmatprep.subr.mxu0 0.0
    %798 = vmatpush1.msra.mxu0 0.0
    %799 = vmatprep.subr.mxu0 0.0
    %800 = vmatpush1.msra.mxu0 0.0
    %801 = vmatprep.subr.mxu0 0.0
    %802 = vmatpush1.msra.mxu0 0.0
    %803 = vmatprep.subr.mxu0 0.0
    %804 = vmatpush1.msra.mxu0 0.0
    %805 = vmatprep.mubr.f32.mxu0 0.0
    %806 = vmatmul.mubr.f32.gmra.mrb[0].mxu0 %v740
    %v807 = vpop.f32.mrb[0].mxu0
    %v808 = vadd.f32 0.0, %v807
    %v809 = vpop.f32.mrb[0].mxu0
    %v810 = vadd.f32 0.0, %v809
    %811 = vdwg.mxu0
    %812 = vmatprep.subr.mxu0 %v352
    %813 = vmatpush1.msra.mxu0 %v351
    %814 = vmatprep.subr.mxu0 %v356
    %815 = vmatpush1.msra.mxu0 %v355
    %816 = vmatprep.subr.mxu0 %v360
    %817 = vmatpush1.msra.mxu0 %v359
    %818 = vmatprep.subr.mxu0 %v364
    %819 = vmatpush1.msra.mxu0 %v363
    %820 = vmatprep.subr.mxu0 %v368
    %821 = vmatpush1.msra.mxu0 %v367
    %822 = vmatprep.subr.mxu0 %v372
    %823 = vmatpush1.msra.mxu0 %v371
    %824 = vmatprep.subr.mxu0 %v376
    %825 = vmatpush1.msra.mxu0 %v375
    %826 = vmatprep.subr.mxu0 %v380
    %827 = vmatpush1.msra.mxu0 %v379
    %828 = vmatprep.subr.mxu0 %v384
    %829 = vmatpush1.msra.mxu0 %v383
    %830 = vmatprep.subr.mxu0 %v388
    %831 = vmatpush1.msra.mxu0 %v387
    %832 = vmatprep.subr.mxu0 %v392
    %833 = vmatpush1.msra.mxu0 %v391
    %834 = vmatprep.subr.mxu0 %v396
    %835 = vmatpush1.msra.mxu0 %v395
    %836 = vmatprep.subr.mxu0 %v400
    %837 = vmatpush1.msra.mxu0 %v399
    %838 = vmatprep.subr.mxu0 %v404
    %839 = vmatpush1.msra.mxu0 %v403
    %840 = vmatprep.subr.mxu0 %v408
    %841 = vmatpush1.msra.mxu0 %v407
    %842 = vmatprep.subr.mxu0 %v412
    %843 = vmatpush1.msra.mxu0 %v411
    %844 = vmatprep.subr.mxu0 0.0
    %845 = vmatpush1.msra.mxu0 0.0
    %846 = vmatprep.subr.mxu0 0.0
    %847 = vmatpush1.msra.mxu0 0.0
    %848 = vmatprep.subr.mxu0 0.0
    %849 = vmatpush1.msra.mxu0 0.0
    %850 = vmatprep.subr.mxu0 0.0
    %851 = vmatpush1.msra.mxu0 0.0
    %852 = vmatprep.subr.mxu0 0.0
    %853 = vmatpush1.msra.mxu0 0.0
    %854 = vmatprep.subr.mxu0 0.0
    %855 = vmatpush1.msra.mxu0 0.0
    %856 = vmatprep.subr.mxu0 0.0
    %857 = vmatpush1.msra.mxu0 0.0
    %858 = vmatprep.subr.mxu0 0.0
    %859 = vmatpush1.msra.mxu0 0.0
    %860 = vmatprep.subr.mxu0 0.0
    %861 = vmatpush1.msra.mxu0 0.0
    %862 = vmatprep.subr.mxu0 0.0
    %863 = vmatpush1.msra.mxu0 0.0
    %864 = vmatprep.subr.mxu0 0.0
    %865 = vmatpush1.msra.mxu0 0.0
    %866 = vmatprep.subr.mxu0 0.0
    %867 = vmatpush1.msra.mxu0 0.0
    %868 = vmatprep.subr.mxu0 0.0
    %869 = vmatpush1.msra.mxu0 0.0
    %870 = vmatprep.subr.mxu0 0.0
    %871 = vmatpush1.msra.mxu0 0.0
    %872 = vmatprep.subr.mxu0 0.0
    %873 = vmatpush1.msra.mxu0 0.0
    %874 = vmatprep.subr.mxu0 0.0
    %875 = vmatpush1.msra.mxu0 0.0
    %876 = vmatprep.mubr.f32.mxu0 0.0
    %877 = vmatmul.mubr.f32.gmra.mrb[0].mxu0 %v740
    %v878 = vpop.f32.mrb[0].mxu0
    %v879 = vadd.f32 0.0, %v878
    %v880 = vpop.f32.mrb[0].mxu0
    %v881 = vadd.f32 0.0, %v880
    %882 = vdwg.mxu0
    %v883 = vadd.f32 %v248, %v808
    %v884 = vadd.f32 %v250, %v810
    %v885 = vadd.f32 %v321, %v879
    %v886 = vadd.f32 %v323, %v881
    %v887 = vmul.f32 %v883, 0.5
    %v888 = vtanh.pop %v887
    %v889 = vmul.f32 %v888, 0.5
    %v890 = vadd.f32 %v889, 0.5
    %v891 = vmul.f32 %v884, 0.5
    %v892 = vtanh.pop %v891
    %v893 = vmul.f32 %v892, 0.5
    %v894 = vadd.f32 %v893, 0.5
    %v895 = vtanh.pop %v885
    %v896 = vmul.f32 %v886, 0.5
    %v897 = vtanh.pop %v896
    %v898 = vmul.f32 %v897, 0.5
    %v899 = vadd.f32 %v898, 0.5
    %v900 = vmul.f32 %v894, %v738
    %v901 = vmul.f32 %v890, %v895
    %v902 = vadd.f32 %v900, %v901
    %v903 = vtanh.pop %v902
    %v904 = vmul.f32 %v899, %v903
    %905 = vmatprep.subr.mxu0 %v350
    %906 = vmatpush1.msra.mxu0 %v349
    %907 = vmatprep.subr.mxu0 %v354
    %908 = vmatpush1.msra.mxu0 %v353
    %909 = vmatprep.subr.mxu0 %v358
    %910 = vmatpush1.msra.mxu0 %v357
    %911 = vmatprep.subr.mxu0 %v362
    %912 = vmatpush1.msra.mxu0 %v361
    %913 = vmatprep.subr.mxu0 %v366
    %914 = vmatpush1.msra.mxu0 %v365
    %915 = vmatprep.subr.mxu0 %v370
    %916 = vmatpush1.msra.mxu0 %v369
    %917 = vmatprep.subr.mxu0 %v374
    %918 = vmatpush1.msra.mxu0 %v373
    %919 = vmatprep.subr.mxu0 %v378
    %920 = vmatpush1.msra.mxu0 %v377
    %921 = vmatprep.subr.mxu0 %v382
    %922 = vmatpush1.msra.mxu0 %v381
    %923 = vmatprep.subr.mxu0 %v386
    %924 = vmatpush1.msra.mxu0 %v385
    %925 = vmatprep.subr.mxu0 %v390
    %926 = vmatpush1.msra.mxu0 %v389
    %927 = vmatprep.subr.mxu0 %v394
    %928 = vmatpush1.msra.mxu0 %v393
    %929 = vmatprep.subr.mxu0 %v398
    %930 = vmatpush1.msra.mxu0 %v397
    %931 = vmatprep.subr.mxu0 %v402
    %932 = vmatpush1.msra.mxu0 %v401
    %933 = vmatprep.subr.mxu0 %v406
    %934 = vmatpush1.msra.mxu0 %v405
    %935 = vmatprep.subr.mxu0 %v410
    %936 = vmatpush1.msra.mxu0 %v409
    %937 = vmatprep.subr.mxu0 0.0
    %938 = vmatpush1.msra.mxu0 0.0
    %939 = vmatprep.subr.mxu0 0.0
    %940 = vmatpush1.msra.mxu0 0.0
    %941 = vmatprep.subr.mxu0 0.0
    %942 = vmatpush1.msra.mxu0 0.0
    %943 = vmatprep.subr.mxu0 0.0
    %944 = vmatpush1.msra.mxu0 0.0
    %945 = vmatprep.subr.mxu0 0.0
    %946 = vmatpush1.msra.mxu0 0.0
    %947 = vmatprep.subr.mxu0 0.0
    %948 = vmatpush1.msra.mxu0 0.0
    %949 = vmatprep.subr.mxu0 0.0
    %950 = vmatpush1.msra.mxu0 0.0
    %951 = vmatprep.subr.mxu0 0.0
    %952 = vmatpush1.msra.mxu0 0.0
    %953 = vmatprep.subr.mxu0 0.0
    %954 = vmatpush1.msra.mxu0 0.0
    %955 = vmatprep.subr.mxu0 0.0
    %956 = vmatpush1.msra.mxu0 0.0
    %957 = vmatprep.subr.mxu0 0.0
    %958 = vmatpush1.msra.mxu0 0.0
    %959 = vmatprep.subr.mxu0 0.0
    %960 = vmatpush1.msra.mxu0 0.0
    %961 = vmatprep.subr.mxu0 0.0
    %962 = vmatpush1.msra.mxu0 0.0
    %963 = vmatprep.subr.mxu0 0.0
    %964 = vmatpush1.msra.mxu0 0.0
    %965 = vmatprep.subr.mxu0 0.0
    %966 = vmatpush1.msra.mxu0 0.0
    %967 = vmatprep.subr.mxu0 0.0
    %968 = vmatpush1.msra.mxu0 0.0
    %969 = vmatprep.mubr.f32.mxu0 0.0
    %970 = vmatmul.mubr.f32.gmra.mrb[0].mxu0 %v904
    %v971 = vpop.f32.mrb[0].mxu0
    %v972 = vadd.f32 0.0, %v971
    %v973 = vpop.f32.mrb[0].mxu0
    %v974 = vadd.f32 0.0, %v973
    %975 = vdwg.mxu0
    %976 = vmatprep.subr.mxu0 %v352
    %977 = vmatpush1.msra.mxu0 %v351
    %978 = vmatprep.subr.mxu0 %v356
    %979 = vmatpush1.msra.mxu0 %v355
    %980 = vmatprep.subr.mxu0 %v360
    %981 = vmatpush1.msra.mxu0 %v359
    %982 = vmatprep.subr.mxu0 %v364
    %983 = vmatpush1.msra.mxu0 %v363
    %984 = vmatprep.subr.mxu0 %v368
    %985 = vmatpush1.msra.mxu0 %v367
    %986 = vmatprep.subr.mxu0 %v372
    %987 = vmatpush1.msra.mxu0 %v371
    %988 = vmatprep.subr.mxu0 %v376
    %989 = vmatpush1.msra.mxu0 %v375
    %990 = vmatprep.subr.mxu0 %v380
    %991 = vmatpush1.msra.mxu0 %v379
    %992 = vmatprep.subr.mxu0 %v384
    %993 = vmatpush1.msra.mxu0 %v383
    %994 = vmatprep.subr.mxu0 %v388
    %995 = vmatpush1.msra.mxu0 %v387
    %996 = vmatprep.subr.mxu0 %v392
    %997 = vmatpush1.msra.mxu0 %v391
    %998 = vmatprep.subr.mxu0 %v396
    %999 = vmatpush1.msra.mxu0 %v395
    %1000 = vmatprep.subr.mxu0 %v400
    %1001 = vmatpush1.msra.mxu0 %v399
    %1002 = vmatprep.subr.mxu0 %v404
    %1003 = vmatpush1.msra.mxu0 %v403
    %1004 = vmatprep.subr.mxu0 %v408
    %1005 = vmatpush1.msra.mxu0 %v407
    %1006 = vmatprep.subr.mxu0 %v412
    %1007 = vmatpush1.msra.mxu0 %v411
    %1008 = vmatprep.subr.mxu0 0.0
    %1009 = vmatpush1.msra.mxu0 0.0
    %1010 = vmatprep.subr.mxu0 0.0
    %1011 = vmatpush1.msra.mxu0 0.0
    %1012 = vmatprep.subr.mxu0 0.0
    %1013 = vmatpush1.msra.mxu0 0.0
    %1014 = vmatprep.subr.mxu0 0.0
    %1015 = vmatpush1.msra.mxu0 0.0
    %1016 = vmatprep.subr.mxu0 0.0
    %1017 = vmatpush1.msra.mxu0 0.0
    %1018 = vmatprep.subr.mxu0 0.0
    %1019 = vmatpush1.msra.mxu0 0.0
    %1020 = vmatprep.subr.mxu0 0.0
    %1021 = vmatpush1.msra.mxu0 0.0
    %1022 = vmatprep.subr.mxu0 0.0
    %1023 = vmatpush1.msra.mxu0 0.0
    %1024 = vmatprep.subr.mxu0 0.0
    %1025 = vmatpush1.msra.mxu0 0.0
    %1026 = vmatprep.subr.mxu0 0.0
    %1027 = vmatpush1.msra.mxu0 0.0
    %1028 = vmatprep.subr.mxu0 0.0
    %1029 = vmatpush1.msra.mxu0 0.0
    %1030 = vmatprep.subr.mxu0 0.0
    %1031 = vmatpush1.msra.mxu0 0.0
    %1032 = vmatprep.subr.mxu0 0.0
    %1033 = vmatpush1.msra.mxu0 0.0
    %1034 = vmatprep.subr.mxu0 0.0
    %1035 = vmatpush1.msra.mxu0 0.0
    %1036 = vmatprep.subr.mxu0 0.0
    %1037 = vmatpush1.msra.mxu0 0.0
    %1038 = vmatprep.subr.mxu0 0.0
    %1039 = vmatpush1.msra.mxu0 0.0
    %1040 = vmatprep.mubr.f32.mxu0 0.0
    %1041 = vmatmul.mubr.f32.gmra.mrb[0].mxu0 %v904
    %v1042 = vpop.f32.mrb[0].mxu0
    %v1043 = vadd.f32 0.0, %v1042
    %v1044 = vpop.f32.mrb[0].mxu0
    %v1045 = vadd.f32 0.0, %v1044
    %1046 = vdwg.mxu0
    %v1047 = vadd.f32 %v252, %v972
    %v1048 = vadd.f32 %v254, %v974
    %v1049 = vadd.f32 %v325, %v1043
    %v1050 = vadd.f32 %v327, %v1045
    %v1051 = vmul.f32 %v1047, 0.5
    %v1052 = vtanh.pop %v1051
    %v1053 = vmul.f32 %v1052, 0.5
    %v1054 = vadd.f32 %v1053, 0.5
    %v1055 = vmul.f32 %v1048, 0.5
    %v1056 = vtanh.pop %v1055
    %v1057 = vmul.f32 %v1056, 0.5
    %v1058 = vadd.f32 %v1057, 0.5
    %v1059 = vtanh.pop %v1049
    %v1060 = vmul.f32 %v1050, 0.5
    %v1061 = vtanh.pop %v1060
    %v1062 = vmul.f32 %v1061, 0.5
    %v1063 = vadd.f32 %v1062, 0.5
    %v1064 = vmul.f32 %v1058, %v902
    %v1065 = vmul.f32 %v1054, %v1059
    %v1066 = vadd.f32 %v1064, %v1065
    %v1067 = vtanh.pop %v1066
    %v1068 = vmul.f32 %v1063, %v1067
    %1069 = vmatprep.subr.mxu0 %v350
    %1070 = vmatpush1.msra.mxu0 %v349
    %1071 = vmatprep.subr.mxu0 %v354
    %1072 = vmatpush1.msra.mxu0 %v353
    %1073 = vmatprep.subr.mxu0 %v358
    %1074 = vmatpush1.msra.mxu0 %v357
    %1075 = vmatprep.subr.mxu0 %v362
    %1076 = vmatpush1.msra.mxu0 %v361
    %1077 = vmatprep.subr.mxu0 %v366
    %1078 = vmatpush1.msra.mxu0 %v365
    %1079 = vmatprep.subr.mxu0 %v370
    %1080 = vmatpush1.msra.mxu0 %v369
    %1081 = vmatprep.subr.mxu0 %v374
    %1082 = vmatpush1.msra.mxu0 %v373
    %1083 = vmatprep.subr.mxu0 %v378
    %1084 = vmatpush1.msra.mxu0 %v377
    %1085 = vmatprep.subr.mxu0 %v382
    %1086 = vmatpush1.msra.mxu0 %v381
    %1087 = vmatprep.subr.mxu0 %v386
    %1088 = vmatpush1.msra.mxu0 %v385
    %1089 = vmatprep.subr.mxu0 %v390
    %1090 = vmatpush1.msra.mxu0 %v389
    %1091 = vmatprep.subr.mxu0 %v394
    %1092 = vmatpush1.msra.mxu0 %v393
    %1093 = vmatprep.subr.mxu0 %v398
    %1094 = vmatpush1.msra.mxu0 %v397
    %1095 = vmatprep.subr.mxu0 %v402
    %1096 = vmatpush1.msra.mxu0 %v401
    %1097 = vmatprep.subr.mxu0 %v406
    %1098 = vmatpush1.msra.mxu0 %v405
    %1099 = vmatprep.subr.mxu0 %v410
    %1100 = vmatpush1.msra.mxu0 %v409
    %1101 = vmatprep.subr.mxu0 0.0
    %1102 = vmatpush1.msra.mxu0 0.0
    %1103 = vmatprep.subr.mxu0 0.0
    %1104 = vmatpush1.msra.mxu0 0.0
    %1105 = vmatprep.subr.mxu0 0.0
    %1106 = vmatpush1.msra.mxu0 0.0
    %1107 = vmatprep.subr.mxu0 0.0
    %1108 = vmatpush1.msra.mxu0 0.0
    %1109 = vmatprep.subr.mxu0 0.0
    %1110 = vmatpush1.msra.mxu0 0.0
    %1111 = vmatprep.subr.mxu0 0.0
    %1112 = vmatpush1.msra.mxu0 0.0
    %1113 = vmatprep.subr.mxu0 0.0
    %1114 = vmatpush1.msra.mxu0 0.0
    %1115 = vmatprep.subr.mxu0 0.0
    %1116 = vmatpush1.msra.mxu0 0.0
    %1117 = vmatprep.subr.mxu0 0.0
    %1118 = vmatpush1.msra.mxu0 0.0
    %1119 = vmatprep.subr.mxu0 0.0
    %1120 = vmatpush1.msra.mxu0 0.0
    %1121 = vmatprep.subr.mxu0 0.0
    %1122 = vmatpush1.msra.mxu0 0.0
    %1123 = vmatprep.subr.mxu0 0.0
    %1124 = vmatpush1.msra.mxu0 0.0
    %1125 = vmatprep.subr.mxu0 0.0
    %1126 = vmatpush1.msra.mxu0 0.0
    %1127 = vmatprep.subr.mxu0 0.0
    %1128 = vmatpush1.msra.mxu0 0.0
    %1129 = vmatprep.subr.mxu0 0.0
    %1130 = vmatpush1.msra.mxu0 0.0
    %1131 = vmatprep.subr.mxu0 0.0
    %1132 = vmatpush1.msra.mxu0 0.0
    %1133 = vmatprep.mubr.f32.mxu0 0.0
    %1134 = vmatmul.mubr.f32.gmra.mrb[0].mxu0 %v1068
    %v1135 = vpop.f32.mrb[0].mxu0
    %v1136 = vadd.f32 0.0, %v1135
    %v1137 = vpop.f32.mrb[0].mxu0
    %v1138 = vadd.f32 0.0, %v1137
    %1139 = vdwg.mxu0
    %1140 = vmatprep.subr.mxu0 %v352
    %1141 = vmatpush1.msra.mxu0 %v351
    %1142 = vmatprep.subr.mxu0 %v356
    %1143 = vmatpush1.msra.mxu0 %v355
    %1144 = vmatprep.subr.mxu0 %v360
    %1145 = vmatpush1.msra.mxu0 %v359
    %1146 = vmatprep.subr.mxu0 %v364
    %1147 = vmatpush1.msra.mxu0 %v363
    %1148 = vmatprep.subr.mxu0 %v368
    %1149 = vmatpush1.msra.mxu0 %v367
    %1150 = vmatprep.subr.mxu0 %v372
    %1151 = vmatpush1.msra.mxu0 %v371
    %1152 = vmatprep.subr.mxu0 %v376
    %1153 = vmatpush1.msra.mxu0 %v375
    %1154 = vmatprep.subr.mxu0 %v380
    %1155 = vmatpush1.msra.mxu0 %v379
    %1156 = vmatprep.subr.mxu0 %v384
    %1157 = vmatpush1.msra.mxu0 %v383
    %1158 = vmatprep.subr.mxu0 %v388
    %1159 = vmatpush1.msra.mxu0 %v387
    %1160 = vmatprep.subr.mxu0 %v392
    %1161 = vmatpush1.msra.mxu0 %v391
    %1162 = vmatprep.subr.mxu0 %v396
    %1163 = vmatpush1.msra.mxu0 %v395
    %1164 = vmatprep.subr.mxu0 %v400
    %1165 = vmatpush1.msra.mxu0 %v399
    %1166 = vmatprep.subr.mxu0 %v404
    %1167 = vmatpush1.msra.mxu0 %v403
    %1168 = vmatprep.subr.mxu0 %v408
    %1169 = vmatpush1.msra.mxu0 %v407
    %1170 = vmatprep.subr.mxu0 %v412
    %1171 = vmatpush1.msra.mxu0 %v411
    %1172 = vmatprep.subr.mxu0 0.0
    %1173 = vmatpush1.msra.mxu0 0.0
    %1174 = vmatprep.subr.mxu0 0.0
    %1175 = vmatpush1.msra.mxu0 0.0
    %1176 = vmatprep.subr.mxu0 0.0
    %1177 = vmatpush1.msra.mxu0 0.0
    %1178 = vmatprep.subr.mxu0 0.0
    %1179 = vmatpush1.msra.mxu0 0.0
    %1180 = vmatprep.subr.mxu0 0.0
    %1181 = vmatpush1.msra.mxu0 0.0
    %1182 = vmatprep.subr.mxu0 0.0
    %1183 = vmatpush1.msra.mxu0 0.0
    %1184 = vmatprep.subr.mxu0 0.0
    %1185 = vmatpush1.msra.mxu0 0.0
    %1186 = vmatprep.subr.mxu0 0.0
    %1187 = vmatpush1.msra.mxu0 0.0
    %1188 = vmatprep.subr.mxu0 0.0
    %1189 = vmatpush1.msra.mxu0 0.0
    %1190 = vmatprep.subr.mxu0 0.0
    %1191 = vmatpush1.msra.mxu0 0.0
    %1192 = vmatprep.subr.mxu0 0.0
    %1193 = vmatpush1.msra.mxu0 0.0
    %1194 = vmatprep.subr.mxu0 0.0
    %1195 = vmatpush1.msra.mxu0 0.0
    %1196 = vmatprep.subr.mxu0 0.0
    %1197 = vmatpush1.msra.mxu0 0.0
    %1198 = vmatprep.subr.mxu0 0.0
    %1199 = vmatpush1.msra.mxu0 0.0
    %1200 = vmatprep.subr.mxu0 0.0
    %1201 = vmatpush1.msra.mxu0 0.0
    %1202 = vmatprep.subr.mxu0 0.0
    %1203 = vmatpush1.msra.mxu0 0.0
    %1204 = vmatprep.mubr.f32.mxu0 0.0
    %1205 = vmatmul.mubr.f32.gmra.mrb[0].mxu0 %v1068
    %v1206 = vpop.f32.mrb[0].mxu0
    %v1207 = vadd.f32 0.0, %v1206
    %v1208 = vpop.f32.mrb[0].mxu0
    %v1209 = vadd.f32 0.0, %v1208
    %1210 = vdwg.mxu0
    %v1211 = vadd.f32 %v258, %v1136
    %v1212 = vadd.f32 %v260, %v1138
    %v1213 = vadd.f32 %v331, %v1207
    %v1214 = vadd.f32 %v333, %v1209
    %v1215 = vmul.f32 %v1211, 0.5
    %v1216 = vtanh.pop %v1215
    %v1217 = vmul.f32 %v1216, 0.5
    %v1218 = vadd.f32 %v1217, 0.5
    %v1219 = vmul.f32 %v1212, 0.5
    %v1220 = vtanh.pop %v1219
    %v1221 = vmul.f32 %v1220, 0.5
    %v1222 = vadd.f32 %v1221, 0.5
    %v1223 = vtanh.pop %v1213
    %v1224 = vmul.f32 %v1214, 0.5
    %v1225 = vtanh.pop %v1224
    %v1226 = vmul.f32 %v1225, 0.5
    %v1227 = vadd.f32 %v1226, 0.5
    %v1228 = vmul.f32 %v1222, %v1066
    %v1229 = vmul.f32 %v1218, %v1223
    %v1230 = vadd.f32 %v1228, %v1229
    %v1231 = vtanh.pop %v1230
    %v1232 = vmul.f32 %v1227, %v1231
    %1233 = vmatprep.subr.mxu0 %v350
    %1234 = vmatpush1.msra.mxu0 %v349
    %1235 = vmatprep.subr.mxu0 %v354
    %1236 = vmatpush1.msra.mxu0 %v353
    %1237 = vmatprep.subr.mxu0 %v358
    %1238 = vmatpush1.msra.mxu0 %v357
    %1239 = vmatprep.subr.mxu0 %v362
    %1240 = vmatpush1.msra.mxu0 %v361
    %1241 = vmatprep.subr.mxu0 %v366
    %1242 = vmatpush1.msra.mxu0 %v365
    %1243 = vmatprep.subr.mxu0 %v370
    %1244 = vmatpush1.msra.mxu0 %v369
    %1245 = vmatprep.subr.mxu0 %v374
    %1246 = vmatpush1.msra.mxu0 %v373
    %1247 = vmatprep.subr.mxu0 %v378
    %1248 = vmatpush1.msra.mxu0 %v377
    %1249 = vmatprep.subr.mxu0 %v382
    %1250 = vmatpush1.msra.mxu0 %v381
    %1251 = vmatprep.subr.mxu0 %v386
    %1252 = vmatpush1.msra.mxu0 %v385
    %1253 = vmatprep.subr.mxu0 %v390
    %1254 = vmatpush1.msra.mxu0 %v389
    %1255 = vmatprep.subr.mxu0 %v394
    %1256 = vmatpush1.msra.mxu0 %v393
    %1257 = vmatprep.subr.mxu0 %v398
    %1258 = vmatpush1.msra.mxu0 %v397
    %1259 = vmatprep.subr.mxu0 %v402
    %1260 = vmatpush1.msra.mxu0 %v401
    %1261 = vmatprep.subr.mxu0 %v406
    %1262 = vmatpush1.msra.mxu0 %v405
    %1263 = vmatprep.subr.mxu0 %v410
    %1264 = vmatpush1.msra.mxu0 %v409
    %1265 = vmatprep.subr.mxu0 0.0
    %1266 = vmatpush1.msra.mxu0 0.0
    %1267 = vmatprep.subr.mxu0 0.0
    %1268 = vmatpush1.msra.mxu0 0.0
    %1269 = vmatprep.subr.mxu0 0.0
    %1270 = vmatpush1.msra.mxu0 0.0
    %1271 = vmatprep.subr.mxu0 0.0
    %1272 = vmatpush1.msra.mxu0 0.0
    %1273 = vmatprep.subr.mxu0 0.0
    %1274 = vmatpush1.msra.mxu0 0.0
    %1275 = vmatprep.subr.mxu0 0.0
    %1276 = vmatpush1.msra.mxu0 0.0
    %1277 = vmatprep.subr.mxu0 0.0
    %1278 = vmatpush1.msra.mxu0 0.0
    %1279 = vmatprep.subr.mxu0 0.0
    %1280 = vmatpush1.msra.mxu0 0.0
    %1281 = vmatprep.subr.mxu0 0.0
    %1282 = vmatpush1.msra.mxu0 0.0
    %1283 = vmatprep.subr.mxu0 0.0
    %1284 = vmatpush1.msra.mxu0 0.0
    %1285 = vmatprep.subr.mxu0 0.0
    %1286 = vmatpush1.msra.mxu0 0.0
    %1287 = vmatprep.subr.mxu0 0.0
    %1288 = vmatpush1.msra.mxu0 0.0
    %1289 = vmatprep.subr.mxu0 0.0
    %1290 = vmatpush1.msra.mxu0 0.0
    %1291 = vmatprep.subr.mxu0 0.0
    %1292 = vmatpush1.msra.mxu0 0.0
    %1293 = vmatprep.subr.mxu0 0.0
    %1294 = vmatpush1.msra.mxu0 0.0
    %1295 = vmatprep.subr.mxu0 0.0
    %1296 = vmatpush1.msra.mxu0 0.0
    %1297 = vmatprep.mubr.f32.mxu0 0.0
    %1298 = vmatmul.mubr.f32.gmra.mrb[0].mxu0 %v1232
    %v1299 = vpop.f32.mrb[0].mxu0
    %v1300 = vadd.f32 0.0, %v1299
    %v1301 = vpop.f32.mrb[0].mxu0
    %v1302 = vadd.f32 0.0, %v1301
    %1303 = vdwg.mxu0
    %1304 = vmatprep.subr.mxu0 %v352
    %1305 = vmatpush1.msra.mxu0 %v351
    %1306 = vmatprep.subr.mxu0 %v356
    %1307 = vmatpush1.msra.mxu0 %v355
    %1308 = vmatprep.subr.mxu0 %v360
    %1309 = vmatpush1.msra.mxu0 %v359
    %1310 = vmatprep.subr.mxu0 %v364
    %1311 = vmatpush1.msra.mxu0 %v363
    %1312 = vmatprep.subr.mxu0 %v368
    %1313 = vmatpush1.msra.mxu0 %v367
    %1314 = vmatprep.subr.mxu0 %v372
    %1315 = vmatpush1.msra.mxu0 %v371
    %1316 = vmatprep.subr.mxu0 %v376
    %1317 = vmatpush1.msra.mxu0 %v375
    %1318 = vmatprep.subr.mxu0 %v380
    %1319 = vmatpush1.msra.mxu0 %v379
    %1320 = vmatprep.subr.mxu0 %v384
    %1321 = vmatpush1.msra.mxu0 %v383
    %1322 = vmatprep.subr.mxu0 %v388
    %1323 = vmatpush1.msra.mxu0 %v387
    %1324 = vmatprep.subr.mxu0 %v392
    %1325 = vmatpush1.msra.mxu0 %v391
    %1326 = vmatprep.subr.mxu0 %v396
    %1327 = vmatpush1.msra.mxu0 %v395
    %1328 = vmatprep.subr.mxu0 %v400
    %1329 = vmatpush1.msra.mxu0 %v399
    %1330 = vmatprep.subr.mxu0 %v404
    %1331 = vmatpush1.msra.mxu0 %v403
    %1332 = vmatprep.subr.mxu0 %v408
    %1333 = vmatpush1.msra.mxu0 %v407
    %1334 = vmatprep.subr.mxu0 %v412
    %1335 = vmatpush1.msra.mxu0 %v411
    %1336 = vmatprep.subr.mxu0 0.0
    %1337 = vmatpush1.msra.mxu0 0.0
    %1338 = vmatprep.subr.mxu0 0.0
    %1339 = vmatpush1.msra.mxu0 0.0
    %1340 = vmatprep.subr.mxu0 0.0
    %1341 = vmatpush1.msra.mxu0 0.0
    %1342 = vmatprep.subr.mxu0 0.0
    %1343 = vmatpush1.msra.mxu0 0.0
    %1344 = vmatprep.subr.mxu0 0.0
    %1345 = vmatpush1.msra.mxu0 0.0
    %1346 = vmatprep.subr.mxu0 0.0
    %1347 = vmatpush1.msra.mxu0 0.0
    %1348 = vmatprep.subr.mxu0 0.0
    %1349 = vmatpush1.msra.mxu0 0.0
    %1350 = vmatprep.subr.mxu0 0.0
    %1351 = vmatpush1.msra.mxu0 0.0
    %1352 = vmatprep.subr.mxu0 0.0
    %1353 = vmatpush1.msra.mxu0 0.0
    %1354 = vmatprep.subr.mxu0 0.0
    %1355 = vmatpush1.msra.mxu0 0.0
    %1356 = vmatprep.subr.mxu0 0.0
    %1357 = vmatpush1.msra.mxu0 0.0
    %1358 = vmatprep.subr.mxu0 0.0
    %1359 = vmatpush1.msra.mxu0 0.0
    %1360 = vmatprep.subr.mxu0 0.0
    %1361 = vmatpush1.msra.mxu0 0.0
    %1362 = vmatprep.subr.mxu0 0.0
    %1363 = vmatpush1.msra.mxu0 0.0
    %1364 = vmatprep.subr.mxu0 0.0
    %1365 = vmatpush1.msra.mxu0 0.0
    %1366 = vmatprep.subr.mxu0 0.0
    %1367 = vmatpush1.msra.mxu0 0.0
    %1368 = vmatprep.mubr.f32.mxu0 0.0
    %1369 = vmatmul.mubr.f32.gmra.mrb[0].mxu0 %v1232
    %v1370 = vpop.f32.mrb[0].mxu0
    %v1371 = vadd.f32 0.0, %v1370
    %v1372 = vpop.f32.mrb[0].mxu0
    %v1373 = vadd.f32 0.0, %v1372
    %1374 = vdwg.mxu0
    %v1375 = vadd.f32 %v262, %v1300
    %v1376 = vadd.f32 %v264, %v1302
    %v1377 = vadd.f32 %v335, %v1371
    %v1378 = vadd.f32 %v337, %v1373
    %v1379 = vmul.f32 %v1375, 0.5
    %v1380 = vtanh.pop %v1379
    %v1381 = vmul.f32 %v1380, 0.5
    %v1382 = vadd.f32 %v1381, 0.5
    %v1383 = vmul.f32 %v1376, 0.5
    %v1384 = vtanh.pop %v1383
    %v1385 = vmul.f32 %v1384, 0.5
    %v1386 = vadd.f32 %v1385, 0.5
    %v1387 = vtanh.pop %v1377
    %v1388 = vmul.f32 %v1378, 0.5
    %v1389 = vtanh.pop %v1388
    %v1390 = vmul.f32 %v1389, 0.5
    %v1391 = vadd.f32 %v1390, 0.5
    %v1392 = vmul.f32 %v1386, %v1230
    %v1393 = vmul.f32 %v1382, %v1387
    %v1394 = vadd.f32 %v1392, %v1393
    %v1395 = vtanh.pop %v1394
    %v1396 = vmul.f32 %v1391, %v1395
    %1397 = vmatprep.subr.mxu0 %v350
    %1398 = vmatpush1.msra.mxu0 %v349
    %1399 = vmatprep.subr.mxu0 %v354
    %1400 = vmatpush1.msra.mxu0 %v353
    %1401 = vmatprep.subr.mxu0 %v358
    %1402 = vmatpush1.msra.mxu0 %v357
    %1403 = vmatprep.subr.mxu0 %v362
    %1404 = vmatpush1.msra.mxu0 %v361
    %1405 = vmatprep.subr.mxu0 %v366
    %1406 = vmatpush1.msra.mxu0 %v365
    %1407 = vmatprep.subr.mxu0 %v370
    %1408 = vmatpush1.msra.mxu0 %v369
    %1409 = vmatprep.subr.mxu0 %v374
    %1410 = vmatpush1.msra.mxu0 %v373
    %1411 = vmatprep.subr.mxu0 %v378
    %1412 = vmatpush1.msra.mxu0 %v377
    %1413 = vmatprep.subr.mxu0 %v382
    %1414 = vmatpush1.msra.mxu0 %v381
    %1415 = vmatprep.subr.mxu0 %v386
    %1416 = vmatpush1.msra.mxu0 %v385
    %1417 = vmatprep.subr.mxu0 %v390
    %1418 = vmatpush1.msra.mxu0 %v389
    %1419 = vmatprep.subr.mxu0 %v394
    %1420 = vmatpush1.msra.mxu0 %v393
    %1421 = vmatprep.subr.mxu0 %v398
    %1422 = vmatpush1.msra.mxu0 %v397
    %1423 = vmatprep.subr.mxu0 %v402
    %1424 = vmatpush1.msra.mxu0 %v401
    %1425 = vmatprep.subr.mxu0 %v406
    %1426 = vmatpush1.msra.mxu0 %v405
    %1427 = vmatprep.subr.mxu0 %v410
    %1428 = vmatpush1.msra.mxu0 %v409
    %1429 = vmatprep.subr.mxu0 0.0
    %1430 = vmatpush1.msra.mxu0 0.0
    %1431 = vmatprep.subr.mxu0 0.0
    %1432 = vmatpush1.msra.mxu0 0.0
    %1433 = vmatprep.subr.mxu0 0.0
    %1434 = vmatpush1.msra.mxu0 0.0
    %1435 = vmatprep.subr.mxu0 0.0
    %1436 = vmatpush1.msra.mxu0 0.0
    %1437 = vmatprep.subr.mxu0 0.0
    %1438 = vmatpush1.msra.mxu0 0.0
    %1439 = vmatprep.subr.mxu0 0.0
    %1440 = vmatpush1.msra.mxu0 0.0
    %1441 = vmatprep.subr.mxu0 0.0
    %1442 = vmatpush1.msra.mxu0 0.0
    %1443 = vmatprep.subr.mxu0 0.0
    %1444 = vmatpush1.msra.mxu0 0.0
    %1445 = vmatprep.subr.mxu0 0.0
    %1446 = vmatpush1.msra.mxu0 0.0
    %1447 = vmatprep.subr.mxu0 0.0
    %1448 = vmatpush1.msra.mxu0 0.0
    %1449 = vmatprep.subr.mxu0 0.0
    %1450 = vmatpush1.msra.mxu0 0.0
    %1451 = vmatprep.subr.mxu0 0.0
    %1452 = vmatpush1.msra.mxu0 0.0
    %1453 = vmatprep.subr.mxu0 0.0
    %1454 = vmatpush1.msra.mxu0 0.0
    %1455 = vmatprep.subr.mxu0 0.0
    %1456 = vmatpush1.msra.mxu0 0.0
    %1457 = vmatprep.subr.mxu0 0.0
    %1458 = vmatpush1.msra.mxu0 0.0
    %1459 = vmatprep.subr.mxu0 0.0
    %1460 = vmatpush1.msra.mxu0 0.0
    %1461 = vmatprep.mubr.f32.mxu0 0.0
    %1462 = vmatmul.mubr.f32.gmra.mrb[0].mxu0 %v1396
    %v1463 = vpop.f32.mrb[0].mxu0
    %v1464 = vadd.f32 0.0, %v1463
    %v1465 = vpop.f32.mrb[0].mxu0
    %v1466 = vadd.f32 0.0, %v1465
    %1467 = vdwg.mxu0
    %1468 = vmatprep.subr.mxu0 %v352
    %1469 = vmatpush1.msra.mxu0 %v351
    %1470 = vmatprep.subr.mxu0 %v356
    %1471 = vmatpush1.msra.mxu0 %v355
    %1472 = vmatprep.subr.mxu0 %v360
    %1473 = vmatpush1.msra.mxu0 %v359
    %1474 = vmatprep.subr.mxu0 %v364
    %1475 = vmatpush1.msra.mxu0 %v363
    %1476 = vmatprep.subr.mxu0 %v368
    %1477 = vmatpush1.msra.mxu0 %v367
    %1478 = vmatprep.subr.mxu0 %v372
    %1479 = vmatpush1.msra.mxu0 %v371
    %1480 = vmatprep.subr.mxu0 %v376
    %1481 = vmatpush1.msra.mxu0 %v375
    %1482 = vmatprep.subr.mxu0 %v380
    %1483 = vmatpush1.msra.mxu0 %v379
    %1484 = vmatprep.subr.mxu0 %v384
    %1485 = vmatpush1.msra.mxu0 %v383
    %1486 = vmatprep.subr.mxu0 %v388
    %1487 = vmatpush1.msra.mxu0 %v387
    %1488 = vmatprep.subr.mxu0 %v392
    %1489 = vmatpush1.msra.mxu0 %v391
    %1490 = vmatprep.subr.mxu0 %v396
    %1491 = vmatpush1.msra.mxu0 %v395
    %1492 = vmatprep.subr.mxu0 %v400
    %1493 = vmatpush1.msra.mxu0 %v399
    %1494 = vmatprep.subr.mxu0 %v404
    %1495 = vmatpush1.msra.mxu0 %v403
    %1496 = vmatprep.subr.mxu0 %v408
    %1497 = vmatpush1.msra.mxu0 %v407
    %1498 = vmatprep.subr.mxu0 %v412
    %1499 = vmatpush1.msra.mxu0 %v411
    %1500 = vmatprep.subr.mxu0 0.0
    %1501 = vmatpush1.msra.mxu0 0.0
    %1502 = vmatprep.subr.mxu0 0.0
    %1503 = vmatpush1.msra.mxu0 0.0
    %1504 = vmatprep.subr.mxu0 0.0
    %1505 = vmatpush1.msra.mxu0 0.0
    %1506 = vmatprep.subr.mxu0 0.0
    %1507 = vmatpush1.msra.mxu0 0.0
    %1508 = vmatprep.subr.mxu0 0.0
    %1509 = vmatpush1.msra.mxu0 0.0
    %1510 = vmatprep.subr.mxu0 0.0
    %1511 = vmatpush1.msra.mxu0 0.0
    %1512 = vmatprep.subr.mxu0 0.0
    %1513 = vmatpush1.msra.mxu0 0.0
    %1514 = vmatprep.subr.mxu0 0.0
    %1515 = vmatpush1.msra.mxu0 0.0
    %1516 = vmatprep.subr.mxu0 0.0
    %1517 = vmatpush1.msra.mxu0 0.0
    %1518 = vmatprep.subr.mxu0 0.0
    %1519 = vmatpush1.msra.mxu0 0.0
    %1520 = vmatprep.subr.mxu0 0.0
    %1521 = vmatpush1.msra.mxu0 0.0
    %1522 = vmatprep.subr.mxu0 0.0
    %1523 = vmatpush1.msra.mxu0 0.0
    %1524 = vmatprep.subr.mxu0 0.0
    %1525 = vmatpush1.msra.mxu0 0.0
    %1526 = vmatprep.subr.mxu0 0.0
    %1527 = vmatpush1.msra.mxu0 0.0
    %1528 = vmatprep.subr.mxu0 0.0
    %1529 = vmatpush1.msra.mxu0 0.0
    %1530 = vmatprep.subr.mxu0 0.0
    %1531 = vmatpush1.msra.mxu0 0.0
    %1532 = vmatprep.mubr.f32.mxu0 0.0
    %1533 = vmatmul.mubr.f32.gmra.mrb[0].mxu0 %v1396
    %v1534 = vpop.f32.mrb[0].mxu0
    %v1535 = vadd.f32 0.0, %v1534
    %v1536 = vpop.f32.mrb[0].mxu0
    %v1537 = vadd.f32 0.0, %v1536
    %1538 = vdwg.mxu0
    %v1539 = vadd.f32 %v268, %v1464
    %v1540 = vadd.f32 %v270, %v1466
    %v1541 = vadd.f32 %v341, %v1535
    %v1542 = vadd.f32 %v343, %v1537
    %v1543 = vmul.f32 %v1539, 0.5
    %v1544 = vtanh.pop %v1543
    %v1545 = vmul.f32 %v1544, 0.5
    %v1546 = vadd.f32 %v1545, 0.5
    %v1547 = vmul.f32 %v1540, 0.5
    %v1548 = vtanh.pop %v1547
    %v1549 = vmul.f32 %v1548, 0.5
    %v1550 = vadd.f32 %v1549, 0.5
    %v1551 = vtanh.pop %v1541
    %v1552 = vmul.f32 %v1542, 0.5
    %v1553 = vtanh.pop %v1552
    %v1554 = vmul.f32 %v1553, 0.5
    %v1555 = vadd.f32 %v1554, 0.5
    %v1556 = vmul.f32 %v1550, %v1394
    %v1557 = vmul.f32 %v1546, %v1551
    %v1558 = vadd.f32 %v1556, %v1557
    %v1559 = vtanh.pop %v1558
    %v1560 = vmul.f32 %v1555, %v1559
    %1561 = vmatprep.subr.mxu0 %v350
    %1562 = vmatpush1.msra.mxu0 %v349
    %1563 = vmatprep.subr.mxu0 %v354
    %1564 = vmatpush1.msra.mxu0 %v353
    %1565 = vmatprep.subr.mxu0 %v358
    %1566 = vmatpush1.msra.mxu0 %v357
    %1567 = vmatprep.subr.mxu0 %v362
    %1568 = vmatpush1.msra.mxu0 %v361
    %1569 = vmatprep.subr.mxu0 %v366
    %1570 = vmatpush1.msra.mxu0 %v365
    %1571 = vmatprep.subr.mxu0 %v370
    %1572 = vmatpush1.msra.mxu0 %v369
    %1573 = vmatprep.subr.mxu0 %v374
    %1574 = vmatpush1.msra.mxu0 %v373
    %1575 = vmatprep.subr.mxu0 %v378
    %1576 = vmatpush1.msra.mxu0 %v377
    %1577 = vmatprep.subr.mxu0 %v382
    %1578 = vmatpush1.msra.mxu0 %v381
    %1579 = vmatprep.subr.mxu0 %v386
    %1580 = vmatpush1.msra.mxu0 %v385
    %1581 = vmatprep.subr.mxu0 %v390
    %1582 = vmatpush1.msra.mxu0 %v389
    %1583 = vmatprep.subr.mxu0 %v394
    %1584 = vmatpush1.msra.mxu0 %v393
    %1585 = vmatprep.subr.mxu0 %v398
    %1586 = vmatpush1.msra.mxu0 %v397
    %1587 = vmatprep.subr.mxu0 %v402
    %1588 = vmatpush1.msra.mxu0 %v401
    %1589 = vmatprep.subr.mxu0 %v406
    %1590 = vmatpush1.msra.mxu0 %v405
    %1591 = vmatprep.subr.mxu0 %v410
    %1592 = vmatpush1.msra.mxu0 %v409
    %1593 = vmatprep.subr.mxu0 0.0
    %1594 = vmatpush1.msra.mxu0 0.0
    %1595 = vmatprep.subr.mxu0 0.0
    %1596 = vmatpush1.msra.mxu0 0.0
    %1597 = vmatprep.subr.mxu0 0.0
    %1598 = vmatpush1.msra.mxu0 0.0
    %1599 = vmatprep.subr.mxu0 0.0
    %1600 = vmatpush1.msra.mxu0 0.0
    %1601 = vmatprep.subr.mxu0 0.0
    %1602 = vmatpush1.msra.mxu0 0.0
    %1603 = vmatprep.subr.mxu0 0.0
    %1604 = vmatpush1.msra.mxu0 0.0
    %1605 = vmatprep.subr.mxu0 0.0
    %1606 = vmatpush1.msra.mxu0 0.0
    %1607 = vmatprep.subr.mxu0 0.0
    %1608 = vmatpush1.msra.mxu0 0.0
    %1609 = vmatprep.subr.mxu0 0.0
    %1610 = vmatpush1.msra.mxu0 0.0
    %1611 = vmatprep.subr.mxu0 0.0
    %1612 = vmatpush1.msra.mxu0 0.0
    %1613 = vmatprep.subr.mxu0 0.0
    %1614 = vmatpush1.msra.mxu0 0.0
    %1615 = vmatprep.subr.mxu0 0.0
    %1616 = vmatpush1.msra.mxu0 0.0
    %1617 = vmatprep.subr.mxu0 0.0
    %1618 = vmatpush1.msra.mxu0 0.0
    %1619 = vmatprep.subr.mxu0 0.0
    %1620 = vmatpush1.msra.mxu0 0.0
    %1621 = vmatprep.subr.mxu0 0.0
    %1622 = vmatpush1.msra.mxu0 0.0
    %1623 = vmatprep.subr.mxu0 0.0
    %1624 = vmatpush1.msra.mxu0 0.0
    %1625 = vmatprep.mubr.f32.mxu0 0.0
    %1626 = vmatmul.mubr.f32.gmra.mrb[0].mxu0 %v1560
    %v1627 = vpop.f32.mrb[0].mxu0
    %v1628 = vadd.f32 0.0, %v1627
    %v1629 = vpop.f32.mrb[0].mxu0
    %v1630 = vadd.f32 0.0, %v1629
    %1631 = vdwg.mxu0
    %1632 = vmatprep.subr.mxu0 %v352
    %1633 = vmatpush1.msra.mxu0 %v351
    %1634 = vmatprep.subr.mxu0 %v356
    %1635 = vmatpush1.msra.mxu0 %v355
    %1636 = vmatprep.subr.mxu0 %v360
    %1637 = vmatpush1.msra.mxu0 %v359
    %1638 = vmatprep.subr.mxu0 %v364
    %1639 = vmatpush1.msra.mxu0 %v363
    %1640 = vmatprep.subr.mxu0 %v368
    %1641 = vmatpush1.msra.mxu0 %v367
    %1642 = vmatprep.subr.mxu0 %v372
    %1643 = vmatpush1.msra.mxu0 %v371
    %1644 = vmatprep.subr.mxu0 %v376
    %1645 = vmatpush1.msra.mxu0 %v375
    %1646 = vmatprep.subr.mxu0 %v380
    %1647 = vmatpush1.msra.mxu0 %v379
    %1648 = vmatprep.subr.mxu0 %v384
    %1649 = vmatpush1.msra.mxu0 %v383
    %1650 = vmatprep.subr.mxu0 %v388
    %1651 = vmatpush1.msra.mxu0 %v387
    %1652 = vmatprep.subr.mxu0 %v392
    %1653 = vmatpush1.msra.mxu0 %v391
    %1654 = vmatprep.subr.mxu0 %v396
    %1655 = vmatpush1.msra.mxu0 %v395
    %1656 = vmatprep.subr.mxu0 %v400
    %1657 = vmatpush1.msra.mxu0 %v399
    %1658 = vmatprep.subr.mxu0 %v404
    %1659 = vmatpush1.msra.mxu0 %v403
    %1660 = vmatprep.subr.mxu0 %v408
    %1661 = vmatpush1.msra.mxu0 %v407
    %1662 = vmatprep.subr.mxu0 %v412
    %1663 = vmatpush1.msra.mxu0 %v411
    %1664 = vmatprep.subr.mxu0 0.0
    %1665 = vmatpush1.msra.mxu0 0.0
    %1666 = vmatprep.subr.mxu0 0.0
    %1667 = vmatpush1.msra.mxu0 0.0
    %1668 = vmatprep.subr.mxu0 0.0
    %1669 = vmatpush1.msra.mxu0 0.0
    %1670 = vmatprep.subr.mxu0 0.0
    %1671 = vmatpush1.msra.mxu0 0.0
    %1672 = vmatprep.subr.mxu0 0.0
    %1673 = vmatpush1.msra.mxu0 0.0
    %1674 = vmatprep.subr.mxu0 0.0
    %1675 = vmatpush1.msra.mxu0 0.0
    %1676 = vmatprep.subr.mxu0 0.0
    %1677 = vmatpush1.msra.mxu0 0.0
    %1678 = vmatprep.subr.mxu0 0.0
    %1679 = vmatpush1.msra.mxu0 0.0
    %1680 = vmatprep.subr.mxu0 0.0
    %1681 = vmatpush1.msra.mxu0 0.0
    %1682 = vmatprep.subr.mxu0 0.0
    %1683 = vmatpush1.msra.mxu0 0.0
    %1684 = vmatprep.subr.mxu0 0.0
    %1685 = vmatpush1.msra.mxu0 0.0
    %1686 = vmatprep.subr.mxu0 0.0
    %1687 = vmatpush1.msra.mxu0 0.0
    %1688 = vmatprep.subr.mxu0 0.0
    %1689 = vmatpush1.msra.mxu0 0.0
    %1690 = vmatprep.subr.mxu0 0.0
    %1691 = vmatpush1.msra.mxu0 0.0
    %1692 = vmatprep.subr.mxu0 0.0
    %1693 = vmatpush1.msra.mxu0 0.0
    %1694 = vmatprep.subr.mxu0 0.0
    %1695 = vmatpush1.msra.mxu0 0.0
    %1696 = vmatprep.mubr.f32.mxu0 0.0
    %1697 = vmatmul.mubr.f32.gmra.mrb[0].mxu0 %v1560
    %v1698 = vpop.f32.mrb[0].mxu0
    %v1699 = vadd.f32 0.0, %v1698
    %v1700 = vpop.f32.mrb[0].mxu0
    %v1701 = vadd.f32 0.0, %v1700
    %1702 = vdwg.mxu0
    %v1703 = vadd.f32 %v272, %v1628
    %v1704 = vadd.f32 %v274, %v1630
    %v1705 = vadd.f32 %v345, %v1699
    %v1706 = vadd.f32 %v347, %v1701
    %v1707 = vmul.f32 %v1703, 0.5
    %v1708 = vtanh.pop %v1707
    %v1709 = vmul.f32 %v1708, 0.5
    %v1710 = vadd.f32 %v1709, 0.5
    %v1711 = vmul.f32 %v1704, 0.5
    %v1712 = vtanh.pop %v1711
    %v1713 = vmul.f32 %v1712, 0.5
    %v1714 = vadd.f32 %v1713, 0.5
    %v1715 = vtanh.pop %v1705
    %v1716 = vmul.f32 %v1706, 0.5
    %v1717 = vtanh.pop %v1716
    %v1718 = vmul.f32 %v1717, 0.5
    %v1719 = vadd.f32 %v1718, 0.5
    %v1720 = vmul.f32 %v1714, %v1558
    %v1721 = vmul.f32 %v1710, %v1715
    %v1722 = vadd.f32 %v1720, %v1721
    %v1723 = vtanh.pop %v1722
    %v1724 = vmul.f32 %v1719, %v1723
    %v1725 = vld [vmem:[%s4] sm:$0xff]
    %v1726 = vld [vmem:[%s4 + $0x8] sm:$0xff]
    %v1727 = vld [vmem:[%s4 + $0x10] sm:$0xff]
    %v1728 = vld [vmem:[%s4 + $0x18] sm:$0xff]
    %v1729 = vld [vmem:[%s4 + $0x20] sm:$0xff]
    %v1730 = vld [vmem:[%s4 + $0x28] sm:$0xff]
    %v1731 = vld [vmem:[%s4 + $0x30] sm:$0xff]
    %v1732 = vld [vmem:[%s4 + $0x38] sm:$0xff]
    %v1733 = vld [vmem:[%s4 + $0x40] sm:$0xff]
    %v1734 = vld [vmem:[%s4 + $0x48] sm:$0xff]
    %v1735 = vld [vmem:[%s4 + $0x50] sm:$0xff]
    %v1736 = vld [vmem:[%s4 + $0x58] sm:$0xff]
    %v1737 = vld [vmem:[%s4 + $0x60] sm:$0xff]
    %v1738 = vld [vmem:[%s4 + $0x68] sm:$0xff]
    %v1739 = vld [vmem:[%s4 + $0x70] sm:$0xff]
    %v1740 = vld [vmem:[%s4 + $0x78] sm:$0xff]
    %v1741 = vld [vmem:[%s5] sm:$0x1]
    %v1743 = vlaneseq
    %v1744 = vshrl.u32 %v1743, 7
    %v1745 = vsub.s32 0, %v1744
    %v1746 = vrot.slane %v1741, %v1745
    %1748 = vmatprep.subr.mxu0 0.0
    %1749 = vmatpush1.msra.mxu0 %v1725
    %1750 = vmatprep.subr.mxu0 0.0
    %1751 = vmatpush1.msra.mxu0 %v1726
    %1752 = vmatprep.subr.mxu0 0.0
    %1753 = vmatpush1.msra.mxu0 %v1727
    %1754 = vmatprep.subr.mxu0 0.0
    %1755 = vmatpush1.msra.mxu0 %v1728
    %1756 = vmatprep.subr.mxu0 0.0
    %1757 = vmatpush1.msra.mxu0 %v1729
    %1758 = vmatprep.subr.mxu0 0.0
    %1759 = vmatpush1.msra.mxu0 %v1730
    %1760 = vmatprep.subr.mxu0 0.0
    %1761 = vmatpush1.msra.mxu0 %v1731
    %1762 = vmatprep.subr.mxu0 0.0
    %1763 = vmatpush1.msra.mxu0 %v1732
    %1764 = vmatprep.subr.mxu0 0.0
    %1765 = vmatpush1.msra.mxu0 %v1733
    %1766 = vmatprep.subr.mxu0 0.0
    %1767 = vmatpush1.msra.mxu0 %v1734
    %1768 = vmatprep.subr.mxu0 0.0
    %1769 = vmatpush1.msra.mxu0 %v1735
    %1770 = vmatprep.subr.mxu0 0.0
    %1771 = vmatpush1.msra.mxu0 %v1736
    %1772 = vmatprep.subr.mxu0 0.0
    %1773 = vmatpush1.msra.mxu0 %v1737
    %1774 = vmatprep.subr.mxu0 0.0
    %1775 = vmatpush1.msra.mxu0 %v1738
    %1776 = vmatprep.subr.mxu0 0.0
    %1777 = vmatpush1.msra.mxu0 %v1739
    %1778 = vmatprep.subr.mxu0 0.0
    %1779 = vmatpush1.msra.mxu0 %v1740
    %1780 = vmatprep.subr.mxu0 0.0
    %1781 = vmatpush1.msra.mxu0 0.0
    %1782 = vmatprep.subr.mxu0 0.0
    %1783 = vmatpush1.msra.mxu0 0.0
    %1784 = vmatprep.subr.mxu0 0.0
    %1785 = vmatpush1.msra.mxu0 0.0
    %1786 = vmatprep.subr.mxu0 0.0
    %1787 = vmatpush1.msra.mxu0 0.0
    %1788 = vmatprep.subr.mxu0 0.0
    %1789 = vmatpush1.msra.mxu0 0.0
    %1790 = vmatprep.subr.mxu0 0.0
    %1791 = vmatpush1.msra.mxu0 0.0
    %1792 = vmatprep.subr.mxu0 0.0
    %1793 = vmatpush1.msra.mxu0 0.0
    %1794 = vmatprep.subr.mxu0 0.0
    %1795 = vmatpush1.msra.mxu0 0.0
    %1796 = vmatprep.subr.mxu0 0.0
    %1797 = vmatpush1.msra.mxu0 0.0
    %1798 = vmatprep.subr.mxu0 0.0
    %1799 = vmatpush1.msra.mxu0 0.0
    %1800 = vmatprep.subr.mxu0 0.0
    %1801 = vmatpush1.msra.mxu0 0.0
    %1802 = vmatprep.subr.mxu0 0.0
    %1803 = vmatpush1.msra.mxu0 0.0
    %1804 = vmatprep.subr.mxu0 0.0
    %1805 = vmatpush1.msra.mxu0 0.0
    %1806 = vmatprep.subr.mxu0 0.0
    %1807 = vmatpush1.msra.mxu0 0.0
    %1808 = vmatprep.subr.mxu0 0.0
    %1809 = vmatpush1.msra.mxu0 0.0
    %1810 = vmatprep.subr.mxu0 0.0
    %1811 = vmatpush1.msra.mxu0 0.0
    %1812 = vmatprep.mubr.f32.mxu0 0.0
    %1813 = vmatmul.mubr.f32.gmra.mrb[0].mxu0 %v1724
    %v1814 = vpop.f32.mrb[0].mxu0
    %v1815 = vadd.f32 %v1746, %v1814
    %v1816 = vpop.f32.mrb[0].mxu0
    %1817 = vdwg.mxu0
    %v1818 = vmax.f32 %v1815, 0.0
    %v1819 = vld [vmem:[%s6] sm:$0xff]
    %v1820 = vld [vmem:[%s6 + $0x8] sm:$0xff]
    %v1821 = vld [vmem:[%s6 + $0x10] sm:$0xff]
    %v1822 = vld [vmem:[%s6 + $0x18] sm:$0xff]
    %v1823 = vld [vmem:[%s6 + $0x20] sm:$0xff]
    %v1824 = vld [vmem:[%s6 + $0x28] sm:$0xff]
    %v1825 = vld [vmem:[%s6 + $0x30] sm:$0xff]
    %v1826 = vld [vmem:[%s6 + $0x38] sm:$0xff]
    %v1827 = vld [vmem:[%s6 + $0x40] sm:$0xff]
    %v1828 = vld [vmem:[%s6 + $0x48] sm:$0xff]
    %v1829 = vld [vmem:[%s6 + $0x50] sm:$0xff]
    %v1830 = vld [vmem:[%s6 + $0x58] sm:$0xff]
    %v1831 = vld [vmem:[%s6 + $0x60] sm:$0xff]
    %v1832 = vld [vmem:[%s6 + $0x68] sm:$0xff]
    %v1833 = vld [vmem:[%s6 + $0x70] sm:$0xff]
    %v1834 = vld [vmem:[%s6 + $0x78] sm:$0xff]
    %v1835 = vld [vmem:[%s7] sm:$0x1]
    %v1837 = vlaneseq
    %v1838 = vshrl.u32 %v1837, 7
    %v1839 = vsub.s32 0, %v1838
    %v1840 = vrot.slane %v1835, %v1839
    %1842 = vmatprep.subr.mxu0 0.0
    %1843 = vmatpush1.msra.mxu0 %v1819
    %1844 = vmatprep.subr.mxu0 0.0
    %1845 = vmatpush1.msra.mxu0 %v1820
    %1846 = vmatprep.subr.mxu0 0.0
    %1847 = vmatpush1.msra.mxu0 %v1821
    %1848 = vmatprep.subr.mxu0 0.0
    %1849 = vmatpush1.msra.mxu0 %v1822
    %1850 = vmatprep.subr.mxu0 0.0
    %1851 = vmatpush1.msra.mxu0 %v1823
    %1852 = vmatprep.subr.mxu0 0.0
    %1853 = vmatpush1.msra.mxu0 %v1824
    %1854 = vmatprep.subr.mxu0 0.0
    %1855 = vmatpush1.msra.mxu0 %v1825
    %1856 = vmatprep.subr.mxu0 0.0
    %1857 = vmatpush1.msra.mxu0 %v1826
    %1858 = vmatprep.subr.mxu0 0.0
    %1859 = vmatpush1.msra.mxu0 %v1827
    %1860 = vmatprep.subr.mxu0 0.0
    %1861 = vmatpush1.msra.mxu0 %v1828
    %1862 = vmatprep.subr.mxu0 0.0
    %1863 = vmatpush1.msra.mxu0 %v1829
    %1864 = vmatprep.subr.mxu0 0.0
    %1865 = vmatpush1.msra.mxu0 %v1830
    %1866 = vmatprep.subr.mxu0 0.0
    %1867 = vmatpush1.msra.mxu0 %v1831
    %1868 = vmatprep.subr.mxu0 0.0
    %1869 = vmatpush1.msra.mxu0 %v1832
    %1870 = vmatprep.subr.mxu0 0.0
    %1871 = vmatpush1.msra.mxu0 %v1833
    %1872 = vmatprep.subr.mxu0 0.0
    %1873 = vmatpush1.msra.mxu0 %v1834
    %1874 = vmatprep.subr.mxu0 0.0
    %1875 = vmatpush1.msra.mxu0 0.0
    %1876 = vmatprep.subr.mxu0 0.0
    %1877 = vmatpush1.msra.mxu0 0.0
    %1878 = vmatprep.subr.mxu0 0.0
    %1879 = vmatpush1.msra.mxu0 0.0
    %1880 = vmatprep.subr.mxu0 0.0
    %1881 = vmatpush1.msra.mxu0 0.0
    %1882 = vmatprep.subr.mxu0 0.0
    %1883 = vmatpush1.msra.mxu0 0.0
    %1884 = vmatprep.subr.mxu0 0.0
    %1885 = vmatpush1.msra.mxu0 0.0
    %1886 = vmatprep.subr.mxu0 0.0
    %1887 = vmatpush1.msra.mxu0 0.0
    %1888 = vmatprep.subr.mxu0 0.0
    %1889 = vmatpush1.msra.mxu0 0.0
    %1890 = vmatprep.subr.mxu0 0.0
    %1891 = vmatpush1.msra.mxu0 0.0
    %1892 = vmatprep.subr.mxu0 0.0
    %1893 = vmatpush1.msra.mxu0 0.0
    %1894 = vmatprep.subr.mxu0 0.0
    %1895 = vmatpush1.msra.mxu0 0.0
    %1896 = vmatprep.subr.mxu0 0.0
    %1897 = vmatpush1.msra.mxu0 0.0
    %1898 = vmatprep.subr.mxu0 0.0
    %1899 = vmatpush1.msra.mxu0 0.0
    %1900 = vmatprep.subr.mxu0 0.0
    %1901 = vmatpush1.msra.mxu0 0.0
    %1902 = vmatprep.subr.mxu0 0.0
    %1903 = vmatpush1.msra.mxu0 0.0
    %1904 = vmatprep.subr.mxu0 0.0
    %1905 = vmatpush1.msra.mxu0 0.0
    %1906 = vmatprep.mubr.f32.mxu0 0.0
    %1907 = vmatmul.mubr.f32.gmra.mrb[0].mxu0 %v1818
    %v1908 = vpop.f32.mrb[0].mxu0
    %v1909 = vadd.f32 %v1840, %v1908
    %v1910 = vpop.f32.mrb[0].mxu0
    %1911 = vdwg.mxu0
    %vm1912 = vcmask 261120
    %1913 = vst.msk [vmem:[%s8] sm:$0xff] %vm1912, %v1909
    // Predicated region
    $region38: #{projector_forward.1} parent=1 // pred_check
      _
    $region39: #{projector_forward.1} parent=1 // pred_check_branch
      %1915 = sbr.rel (0) target = $region41
    $region40: #{projector_forward.1} parent=1 // pred_region
      _
    $region41: #{projector_forward.1} parent=1 // pred_fallthru
      _
    // Predicated region
    $region42: #{projector_forward.1} parent=1 // pred_check
      _
    $region43: #{projector_forward.1} parent=1 // pred_check_branch
      %1917 = sbr.rel (0) target = $region45
    $region44: #{projector_forward.1} parent=1 // pred_region
      _
    $region45: #{projector_forward.1} parent=1 // pred_fallthru
      _
    %1918 = vsyncpa [#allocation3], 1

</llo_original>
